<compile_context>
chip_gen: v7x
topology: tpu7x:2x2x1
jax: 0.10.0
libtpu: 0.0.40
codegen_flags: <defaults>
</compile_context>

<pallas_src>
import functools

import jax
import jax.numpy as jnp
from jax.experimental import pallas as pl
from jax.experimental.pallas import tpu as pltpu


# ----------------------------------------------------------------------------
# helpers
# ----------------------------------------------------------------------------
def _round_up(x, m):
    return ((x + m - 1) // m) * m


# ----------------------------------------------------------------------------
# Pallas kernels: fused (patches @ W) + folded bias/BN shift (+ LeakyReLU)
# ----------------------------------------------------------------------------
def _fused_matmul_kernel_1step(a_ref, w_ref, t_ref, o_ref, *, slope, apply_act):
    """Whole K reduction in one tile: no accumulator scratch, no pl.when."""
    y = jnp.dot(a_ref[...], w_ref[...], preferred_element_type=jnp.float32)
    y = y + t_ref[...]                       # folded bias / BN shift (f32)
    if apply_act:
        y = jnp.where(y >= 0, y, slope * y)  # LeakyReLU (f32 epilogue)
    o_ref[...] = y.astype(o_ref.dtype)


def _fused_matmul_kernel_multi(a_ref, w_ref, t_ref, o_ref, acc_ref, *,
                               slope, apply_act):
    """K split over grid axis 2: f32 VMEM accumulator, epilogue at k == last."""
    k = pl.program_id(2)

    @pl.when(k == 0)
    def _():
        acc_ref[...] = jnp.zeros_like(acc_ref)

    acc_ref[...] += jnp.dot(a_ref[...], w_ref[...],
                            preferred_element_type=jnp.float32)

    @pl.when(k == pl.num_programs(2) - 1)
    def _():
        y = acc_ref[...] + t_ref[...]
        if apply_act:
            y = jnp.where(y >= 0, y, slope * y)
        o_ref[...] = y.astype(o_ref.dtype)


def _fused_conv_matmul(patches, w2d, shift, *, tk, slope, apply_act, out_dtype):
    """patches: [M, K] bf16, w2d: [Kp, Np] bf16 (pre-packed), shift: [1, Np] f32.

    Returns [M, Np] out_dtype (channels stay lane-padded for the next layer).
    """
    M, K = patches.shape
    Kp, Np = w2d.shape
    assert Kp % tk == 0 and Kp >= K and Np % 128 == 0

    TM = min(_round_up(M, 16), 512)     # raise M tile first (review, v6e)
    TN = min(Np, 128)                   # OC <= 16 -> N is mostly zero padding
    TK = tk

    # v7x has two TensorCores sharded over 'parallel' grid axes; make sure the
    # parallel grid has >= 2 steps when it would otherwise be (1, 1).  Costs at
    # most one extra ~0.35us grid step on single-core v5e/v6e.
    if _round_up(M, TM) == TM and Np == TN and TM >= 32:
        TM = max(16, _round_up(TM // 2, 16))
    Mp = _round_up(M, TM)

    a = patches
    if (Mp - M) or (Kp - K):
        # Padded K columns multiply zero weight rows; padded M rows are sliced
        # off below.
        a = jnp.pad(a, ((0, Mp - M), (0, Kp - K)))
    a = a.astype(jnp.bfloat16)          # no-op when activations are already bf16

    grid_k = Kp // TK
    out_bytes = jnp.dtype(out_dtype).itemsize

    # Right-size the scoped VMEM limit from the actual block footprint
    # (double-buffered inputs/outputs + f32 accumulator), with headroom.
    footprint = 2 * (TM * TK * 2 + TK * TN * 2 + TN * 4 + TM * TN * out_bytes) \
        + TM * TN * 4
    vmem_limit = int(min(32 * 1024 * 1024, max(8 * 1024 * 1024, 2 * footprint)))

    cost = pl.CostEstimate(
        flops=2 * Mp * Kp * Np,
        transcendentals=0,
        bytes_accessed=Mp * Kp * 2 + Kp * Np * 2 + Np * 4 + Mp * Np * out_bytes,
    )

    if grid_k == 1:
        kernel = functools.partial(_fused_matmul_kernel_1step,
                                   slope=slope, apply_act=apply_act)
        out = pl.pallas_call(
            kernel,
            out_shape=jax.ShapeDtypeStruct((Mp, Np), out_dtype),
            grid_spec=pltpu.PrefetchScalarGridSpec(
                num_scalar_prefetch=0,
                grid=(Mp // TM, Np // TN),
                in_specs=[
                    pl.BlockSpec((TM, TK), lambda i, j: (i, 0)),
                    pl.BlockSpec((TK, TN), lambda i, j: (0, j)),
                    pl.BlockSpec((1, TN), lambda i, j: (0, j)),
                ],
                out_specs=pl.BlockSpec((TM, TN), lambda i, j: (i, j)),
            ),
            compiler_params=pltpu.CompilerParams(
                dimension_semantics=("parallel", "parallel"),
                vmem_limit_bytes=vmem_limit,
            ),
            cost_estimate=cost,
        )(a, w2d, shift)
    else:
        kernel = functools.partial(_fused_matmul_kernel_multi,
                                   slope=slope, apply_act=apply_act)
        out = pl.pallas_call(
            kernel,
            out_shape=jax.ShapeDtypeStruct((Mp, Np), out_dtype),
            grid_spec=pltpu.PrefetchScalarGridSpec(
                num_scalar_prefetch=0,
                grid=(Mp // TM, Np // TN, grid_k),
                in_specs=[
                    pl.BlockSpec((TM, TK), lambda i, j, k: (i, k)),
                    pl.BlockSpec((TK, TN), lambda i, j, k: (k, j)),
                    pl.BlockSpec((1, TN), lambda i, j, k: (0, j)),
                ],
                out_specs=pl.BlockSpec((TM, TN), lambda i, j, k: (i, j)),
                scratch_shapes=[pltpu.VMEM((TM, TN), jnp.float32)],
            ),
            compiler_params=pltpu.CompilerParams(
                dimension_semantics=("parallel", "parallel", "arbitrary"),
                vmem_limit_bytes=vmem_limit,
            ),
            cost_estimate=cost,
        )(a, w2d, shift)

    if Mp > M:
        out = out[:M]
    return out


# ----------------------------------------------------------------------------
# Glue: NHWC im2col + conv layer wrapper (no per-layer transposes / slices)
# ----------------------------------------------------------------------------
def _extract_patches_nhwc(x, kh, kw, stride, pad):
    # x: [N, H, W, C] -> patches [N*OH*OW, KH*KW*C] with (kh, kw, c) ordering
    n, h, w, c = x.shape
    xp = jnp.pad(x, ((0, 0), (pad, pad), (pad, pad), (0, 0)))
    oh = (h + 2 * pad - kh) // stride + 1
    ow = (w + 2 * pad - kw) // stride + 1
    cols = []
    for ih in range(kh):
        for iw in range(kw):
            cols.append(xp[:,
                           ih:ih + stride * (oh - 1) + 1:stride,
                           iw:iw + stride * (ow - 1) + 1:stride, :])
    p = jnp.stack(cols, axis=3)                      # [N, OH, OW, KH*KW, C]
    p = p.reshape(n * oh * ow, kh * kw * c)
    return p, oh, ow


def conv_layer_nhwc(x, w2d, shift, *, kh, kw, tk, oc_pad, stride, pad,
                    slope, apply_act):
    """x: NHWC bf16 (channels lane-padded); returns NHWC bf16 with oc_pad channels."""
    n = x.shape[0]
    patches, oh, ow = _extract_patches_nhwc(x, kh, kw, stride, pad)
    out = _fused_conv_matmul(patches, w2d, shift, tk=tk, slope=slope,
                             apply_act=apply_act, out_dtype=jnp.bfloat16)
    # Keep channels lane-padded (oc_pad, multiple of 128): lane-dense stores in
    # this layer and no re-pad/cast pass in the next layer.  Pure reshape,
    # no transpose.
    return out.reshape(n, oh, ow, oc_pad)


# ----------------------------------------------------------------------------
# Parameters
# ----------------------------------------------------------------------------
def init_patchgan_params(key, in_channels, hidden_channels, kernel_size):
    """Deterministic parameter init mirroring the module's __init__ shapes."""
    params = []
    bn_eps = 1e-5
    chans = [in_channels] + list(hidden_channels)
    batch_norm = False
    for in_c, out_c in zip(chans[:-1], chans[1:]):
        key, kw_, kb_ = jax.random.split(key, 3)
        fan_in = in_c * kernel_size * kernel_size
        w = jax.random.normal(kw_, (out_c, in_c, kernel_size, kernel_size),
                              jnp.float32) * (1.0 / jnp.sqrt(fan_in))
        b = jax.random.normal(kb_, (out_c,), jnp.float32) * 0.01
        if batch_norm:
            gamma = jnp.ones((out_c,), jnp.float32)
            beta = jnp.zeros((out_c,), jnp.float32)
            run_mean = jnp.zeros((out_c,), jnp.float32)
            run_var = jnp.ones((out_c,), jnp.float32)
            scale = gamma / jnp.sqrt(run_var + bn_eps)
            shift = beta - run_mean * scale
        else:
            scale = jnp.ones((out_c,), jnp.float32)
            shift = jnp.zeros((out_c,), jnp.float32)
        params.append(dict(w=w, b=b, scale=scale, shift=shift))
        batch_norm = True
    # final Conv2d(hidden[-1], 1, kernel_size) -- default stride=1, padding=0
    key, kw_, kb_ = jax.random.split(key, 3)
    fan_in = hidden_channels[-1] * kernel_size * kernel_size
    w = jax.random.normal(kw_, (1, hidden_channels[-1], kernel_size, kernel_size),
                          jnp.float32) * (1.0 / jnp.sqrt(fan_in))
    b = jax.random.normal(kb_, (1,), jnp.float32) * 0.01
    params.append(dict(w=w, b=b,
                       scale=jnp.ones((1,), jnp.float32),
                       shift=jnp.zeros((1,), jnp.float32)))
    return params


def prepare_params(params, in_channels):
    """One-time, outside-jit parameter packing (perf review #3):
       * fold eval-mode BN scale/shift + conv bias into (W', shift')
       * zero-pad the input-channel dim to match the lane-padded activation
         carried from the previous layer (keeps padded channels exactly zero)
       * transpose to (KH*KW*IC_pad, OC), lane-pad OC to a multiple of 128,
         cast weights to bf16 and shifts to f32.
    Returns (weights, plan): weights = arrays only (a jit argument), plan =
    static Python metadata (bound via functools.partial).
    """
    weights, plan = [], []
    c_in_pad = _round_up(in_channels, 8)   # first-layer input channel pad
    n_layers = len(params)
    for li, p in enumerate(params):
        oc, ic, kh, kw = p["w"].shape
        s = p["scale"]
        w = p["w"] * s[:, None, None, None]          # BN scale folded into W
        shift = p["b"] * s + p["shift"]              # folded bias/BN shift
        # zero rows for padded input channels (padded activations are also 0)
        w = jnp.pad(w, ((0, 0), (0, c_in_pad - ic), (0, 0), (0, 0)))
        k_raw = kh * kw * c_in_pad
        # [OC, ICp, KH, KW] -> [KH, KW, ICp, OC] -> [KH*KW*ICp, OC]
        w2d = w.transpose(2, 3, 1, 0).reshape(k_raw, oc)
        if li == n_layers - 1:
            # final OC=1 conv stays a plain dot in the forward (perf review #6)
            weights.append(dict(w2d=w2d.astype(jnp.bfloat16),
                                shift=shift.astype(jnp.float32)))
            plan.append(dict(kind="final", kh=kh, kw=kw, oc=oc,
                             c_in_pad=c_in_pad))
        else:
            oc_pad = _round_up(oc, 128)                    # lane-dense output
            tk = min(_round_up(k_raw, 128), 1024)          # K tile (review)
            kp = _round_up(k_raw, tk)
            w2d = jnp.pad(w2d, ((0, kp - k_raw), (0, oc_pad - oc))).astype(jnp.bfloat16)
            shift2d = jnp.pad(shift.reshape(1, oc),
                              ((0, 0), (0, oc_pad - oc))).astype(jnp.float32)
            weights.append(dict(w2d=w2d, shift=shift2d))
            plan.append(dict(kind="down", kh=kh, kw=kw, oc=oc, oc_pad=oc_pad,
                             k_raw=k_raw, tk=tk, c_in_pad=c_in_pad))
            c_in_pad = oc_pad            # next layer consumes padded channels
    return weights, plan


# ----------------------------------------------------------------------------
# PatchGAN forward
# ----------------------------------------------------------------------------
def patchgan_forward(weights, x, y, *, plan, padding, stride, relu_slope):
    # cat along the channel dim (NCHW), then ONE layout change to NHWC for the
    # whole network; bf16 activations end-to-end (f32 MXU accumulation).
    h = jnp.concatenate((x, y), axis=1).transpose(0, 2, 3, 1)
    c0, c0_pad = h.shape[-1], plan[0]["c_in_pad"]
    if c0_pad > c0:
        h = jnp.pad(h, ((0, 0), (0, 0), (0, 0), (0, c0_pad - c0)))
    h = h.astype(jnp.bfloat16)

    # DownBlocks: conv + (folded eval-mode BN/bias) + LeakyReLU, all in one
    # Pallas matmul kernel per layer.
    for wq, pq in zip(weights[:-1], plan[:-1]):
        h = conv_layer_nhwc(h, wq["w2d"], wq["shift"],
                            kh=pq["kh"], kw=pq["kw"], tk=pq["tk"],
                            oc_pad=pq["oc_pad"],
                            stride=stride, pad=padding,
                            slope=relu_slope, apply_act=True)

    # Final Conv2d(hidden[-1] -> 1, kernel_size), stride=1, padding=0.
    # ~512 useful FLOPs at these shapes -> plain dot; a pallas_call here is
    # 100% launch/padding overhead (perf review #6).
    wq, pq = weights[-1], plan[-1]
    n = h.shape[0]
    patches, oh, ow = _extract_patches_nhwc(h, pq["kh"], pq["kw"], 1, 0)
    out = jnp.dot(patches, wq["w2d"], preferred_element_type=jnp.float32)
    out = out + wq["shift"]
    out = out.reshape(n, oh, ow, pq["oc"])
    return out.transpose(0, 3, 1, 2)                  # back to NCHW


if __name__ == "__main__":
    # Config (PatchGAN __init__ args)
    in_channels = 4                 # channels after cat(x, y) on dim=1
    hidden_channels = [8, 16]
    kernel_size = 4
    padding = 1
    stride = 2
    relu_slope = 0.2

    key = jax.random.PRNGKey(0)
    kp, kx, ky = jax.random.split(key, 3)
    params = init_patchgan_params(kp, in_channels, hidden_channels, kernel_size)
    weights, plan = prepare_params(params, in_channels)   # one-time, outside jit

    # Small deterministic inputs: x, y each NCHW with 2 channels -> cat = 4
    x = jax.random.normal(kx, (2, 2, 16, 16), jnp.float32)
    y = jax.random.normal(ky, (2, 2, 16, 16), jnp.float32)

    fwd = jax.jit(functools.partial(patchgan_forward, plan=plan,
                                    padding=padding, stride=stride,
                                    relu_slope=relu_slope))
    out = fwd(weights, x, y)
    jax.block_until_ready(out)
    assert out.shape == (2, 1, 1, 1), out.shape
    assert out.dtype == jnp.float32
    print("KERNEL_OK")
</pallas_src>

<mosaic_0001>
module attributes {stable_mosaic.version = 11 : i64} {
  func.func @_fused_matmul_kernel_1step(%arg0: i32, %arg1: i32, %arg2: memref<64x128xbf16, #tpu.memory_space<vmem>>, %arg3: memref<128x128xbf16, #tpu.memory_space<vmem>>, %arg4: memref<1x128xf32, #tpu.memory_space<vmem>>, %arg5: memref<64x128xbf16, #tpu.memory_space<vmem>>) attributes {dimension_semantics = [#tpu.dimension_semantics<parallel>, #tpu.dimension_semantics<parallel>], iteration_bounds = array<i64: 2, 1>, scalar_prefetch = 0 : i64, scratch_operands = 0 : i64, tpu.core_type = #tpu.core_type<tc>, window_params = [{transform_indices = @transform_0, window_bounds = array<i64: 64, 128>}, {transform_indices = @transform_1, window_bounds = array<i64: 128, 128>}, {transform_indices = @transform_2, window_bounds = array<i64: 1, 128>}, {transform_indices = @transform_3, window_bounds = array<i64: 64, 128>}]} {
    %c0 = arith.constant 0 : index
    %c0_0 = arith.constant 0 : index
    %0 = vector.load %arg2[%c0, %c0_0] : memref<64x128xbf16, #tpu.memory_space<vmem>>, vector<64x128xbf16>
    %c0_1 = arith.constant 0 : index
    %c0_2 = arith.constant 0 : index
    %1 = vector.load %arg3[%c0_1, %c0_2] : memref<128x128xbf16, #tpu.memory_space<vmem>>, vector<128x128xbf16>
    %cst = arith.constant dense<0.000000e+00> : vector<64x128xf32>
    %2 = tpu.matmul %0, %1, %cst {dimension_numbers = #tpu.dot_dimension_numbers<[1], [0], [0], [1], [0, 0, 1, 1], [], []>} : vector<64x128xbf16>, vector<128x128xbf16>, vector<64x128xf32> -> vector<64x128xf32>
    %c0_3 = arith.constant 0 : index
    %c0_4 = arith.constant 0 : index
    %3 = vector.load %arg4[%c0_3, %c0_4] : memref<1x128xf32, #tpu.memory_space<vmem>>, vector<1x128xf32>
    %4 = vector.broadcast %3 : vector<1x128xf32> to vector<64x128xf32>
    %5 = arith.addf %2, %4 : vector<64x128xf32>
    %cst_5 = arith.constant 0.000000e+00 : f32
    %6 = vector.broadcast %cst_5 : f32 to vector<64x128xf32>
    %7 = arith.cmpf oge, %5, %6 : vector<64x128xf32>
    %cst_6 = arith.constant 2.000000e-01 : f32
    %8 = vector.broadcast %cst_6 : f32 to vector<64x128xf32>
    %9 = arith.mulf %8, %5 : vector<64x128xf32>
    %10 = arith.select %7, %5, %9 : vector<64x128xi1>, vector<64x128xf32>
    %11 = arith.truncf %10 : vector<64x128xf32> to vector<64x128xbf16>
    %c0_7 = arith.constant 0 : index
    %c0_8 = arith.constant 0 : index
    %12 = vector.load %arg5[%c0_7, %c0_8] : memref<64x128xbf16, #tpu.memory_space<vmem>>, vector<64x128xbf16>
    tpu.vector_store %arg5[%c0_7, %c0_8], %11 {strides = array<i32>} : memref<64x128xbf16, #tpu.memory_space<vmem>>, vector<64x128xbf16>,
    return
  }
  func.func @transform_0(%arg0: i32, %arg1: i32) -> (i32, i32) {
    %c0_i32 = arith.constant 0 : i32
    %c0_i32_0 = arith.constant 0 : i32
    return %arg0, %c0_i32 : i32, i32
  }
  func.func @transform_1(%arg0: i32, %arg1: i32) -> (i32, i32) {
    %c0_i32 = arith.constant 0 : i32
    %c0_i32_0 = arith.constant 0 : i32
    return %c0_i32, %arg1 : i32, i32
  }
  func.func @transform_2(%arg0: i32, %arg1: i32) -> (i32, i32) {
    %c0_i32 = arith.constant 0 : i32
    %c0_i32_0 = arith.constant 0 : i32
    return %c0_i32, %arg1 : i32, i32
  }
  func.func @transform_3(%arg0: i32, %arg1: i32) -> (i32, i32) {
    %c0_i32 = arith.constant 0 : i32
    return %arg0, %arg1 : i32, i32
  }
}

module attributes {stable_mosaic.version = 11 : i64} {
  func.func @_fused_matmul_kernel_multi(%arg0: i32, %arg1: i32, %arg2: i32, %arg3: memref<16x1024xbf16, #tpu.memory_space<vmem>>, %arg4: memref<1024x128xbf16, #tpu.memory_space<vmem>>, %arg5: memref<1x128xf32, #tpu.memory_space<vmem>>, %arg6: memref<16x128xbf16, #tpu.memory_space<vmem>>, %arg7: memref<16x128xf32, #tpu.memory_space<vmem>>) attributes {dimension_semantics = [#tpu.dimension_semantics<parallel>, #tpu.dimension_semantics<parallel>, #tpu.dimension_semantics<arbitrary>], iteration_bounds = array<i64: 2, 1, 2>, scalar_prefetch = 0 : i64, scratch_operands = 1 : i64, tpu.core_type = #tpu.core_type<tc>, window_params = [{transform_indices = @transform_0, window_bounds = array<i64: 16, 1024>}, {transform_indices = @transform_1, window_bounds = array<i64: 1024, 128>}, {transform_indices = @transform_2, window_bounds = array<i64: 1, 128>}, {transform_indices = @transform_3, window_bounds = array<i64: 16, 128>}]} {
    %c0_i32 = arith.constant 0 : i32
    %0 = arith.cmpi eq, %arg2, %c0_i32 : i32
    %1 = arith.extui %0 : i1 to i32
    %c0_i32_0 = arith.constant 0 : i32
    %2 = arith.cmpi ne, %1, %c0_i32_0 : i32
    scf.if %2 {
      %cst_9 = arith.constant 0.000000e+00 : f32
      %12 = vector.broadcast %cst_9 : f32 to vector<16x128xf32>
      %c0_10 = arith.constant 0 : index
      %c0_11 = arith.constant 0 : index
      %13 = vector.load %arg7[%c0_10, %c0_11] : memref<16x128xf32, #tpu.memory_space<vmem>>, vector<16x128xf32>
      tpu.vector_store %arg7[%c0_10, %c0_11], %12 {strides = array<i32>} : memref<16x128xf32, #tpu.memory_space<vmem>>, vector<16x128xf32>,
    } else {
    }
    %c0 = arith.constant 0 : index
    %c0_1 = arith.constant 0 : index
    %3 = vector.load %arg7[%c0, %c0_1] : memref<16x128xf32, #tpu.memory_space<vmem>>, vector<16x128xf32>
    %c0_2 = arith.constant 0 : index
    %c0_3 = arith.constant 0 : index
    %4 = vector.load %arg3[%c0_2, %c0_3] : memref<16x1024xbf16, #tpu.memory_space<vmem>>, vector<16x1024xbf16>
    %c0_4 = arith.constant 0 : index
    %c0_5 = arith.constant 0 : index
    %5 = vector.load %arg4[%c0_4, %c0_5] : memref<1024x128xbf16, #tpu.memory_space<vmem>>, vector<1024x128xbf16>
    %cst = arith.constant dense<0.000000e+00> : vector<16x128xf32>
    %6 = tpu.matmul %4, %5, %cst {dimension_numbers = #tpu.dot_dimension_numbers<[1], [0], [0], [1], [0, 0, 1, 1], [], []>} : vector<16x1024xbf16>, vector<1024x128xbf16>, vector<16x128xf32> -> vector<16x128xf32>
    %7 = arith.addf %3, %6 : vector<16x128xf32>
    %c0_6 = arith.constant 0 : index
    %c0_7 = arith.constant 0 : index
    %8 = vector.load %arg7[%c0_6, %c0_7] : memref<16x128xf32, #tpu.memory_space<vmem>>, vector<16x128xf32>
    tpu.vector_store %arg7[%c0_6, %c0_7], %7 {strides = array<i32>} : memref<16x128xf32, #tpu.memory_space<vmem>>, vector<16x128xf32>,
    %c1_i32 = arith.constant 1 : i32
    %9 = arith.cmpi eq, %arg2, %c1_i32 : i32
    %10 = arith.extui %9 : i1 to i32
    %c0_i32_8 = arith.constant 0 : i32
    %11 = arith.cmpi ne, %10, %c0_i32_8 : i32
    scf.if %11 {
      %c0_9 = arith.constant 0 : index
      %c0_10 = arith.constant 0 : index
      %12 = vector.load %arg7[%c0_9, %c0_10] : memref<16x128xf32, #tpu.memory_space<vmem>>, vector<16x128xf32>
      %c0_11 = arith.constant 0 : index
      %c0_12 = arith.constant 0 : index
      %13 = vector.load %arg5[%c0_11, %c0_12] : memref<1x128xf32, #tpu.memory_space<vmem>>, vector<1x128xf32>
      %14 = vector.broadcast %13 : vector<1x128xf32> to vector<16x128xf32>
      %15 = arith.addf %12, %14 : vector<16x128xf32>
      %cst_13 = arith.constant 0.000000e+00 : f32
      %16 = vector.broadcast %cst_13 : f32 to vector<16x128xf32>
      %17 = arith.cmpf oge, %15, %16 : vector<16x128xf32>
      %cst_14 = arith.constant 2.000000e-01 : f32
      %18 = vector.broadcast %cst_14 : f32 to vector<16x128xf32>
      %19 = arith.mulf %18, %15 : vector<16x128xf32>
      %20 = arith.select %17, %15, %19 : vector<16x128xi1>, vector<16x128xf32>
      %21 = arith.truncf %20 : vector<16x128xf32> to vector<16x128xbf16>
      %c0_15 = arith.constant 0 : index
      %c0_16 = arith.constant 0 : index
      %22 = vector.load %arg6[%c0_15, %c0_16] : memref<16x128xbf16, #tpu.memory_space<vmem>>, vector<16x128xbf16>
      tpu.vector_store %arg6[%c0_15, %c0_16], %21 {strides = array<i32>} : memref<16x128xbf16, #tpu.memory_space<vmem>>, vector<16x128xbf16>,
    } else {
    }
    return
  }
  func.func @transform_0(%arg0: i32, %arg1: i32, %arg2: i32) -> (i32, i32) {
    %c0_i32 = arith.constant 0 : i32
    return %arg0, %arg2 : i32, i32
  }
  func.func @transform_1(%arg0: i32, %arg1: i32, %arg2: i32) -> (i32, i32) {
    %c0_i32 = arith.constant 0 : i32
    return %arg2, %arg1 : i32, i32
  }
  func.func @transform_2(%arg0: i32, %arg1: i32, %arg2: i32) -> (i32, i32) {
    %c0_i32 = arith.constant 0 : i32
    %c0_i32_0 = arith.constant 0 : i32
    return %c0_i32, %arg1 : i32, i32
  }
  func.func @transform_3(%arg0: i32, %arg1: i32, %arg2: i32) -> (i32, i32) {
    %c0_i32 = arith.constant 0 : i32
    return %arg0, %arg1 : i32, i32
  }
}

</mosaic_0001>

<llo_original>
// kernel: patchgan_forward.2
$region0: #{patchgan_forward.2}
  #allocation0 [shape = 'u32[]', space=smem, size = 0x4, offset = 0x4, fixed_abs, tag = 'smem constant byte address 0x4 - core index']
  #allocation1 [shape = 'u32[144,128]{1,0:T(1,128)}', space=vmem, size = 0x12000, scoped, tag = 'internal scratch']
  %s0 = inlined_call_operand.vmem [shape: bf16[128,128], index: 0, kind: input, shape index: {}]
  %s1 = inlined_call_operand.vmem [shape: bf16[128,128], index: 1, kind: input, shape index: {}]
  %s2 = inlined_call_operand.vmem [shape: f32[1,128], index: 2, kind: input, shape index: {}]
  %s3 = inlined_call_operand.vmem [shape: bf16[128,128], index: 3, kind: output, shape index: {}]
  %s4 = sld [smem:[#allocation0]]
  $region45: #{patchgan_forward.2} parent=0
    _
  %s6 = ssub.s32 1, %s4
  %s7 = scalar_select 0, %s6, %s4
  loop: start=0, step=1, limit=4
  $region2: #{patchgan_forward.2} parent=0 // loop_pre_header
    _
  $region3: #{patchgan_forward.2} parent=0 // loop_header
    %s9 = sphi 0, %s13
    %p10 = scmp.ge.s32.totalorder %s9, 4
    %s16 = sphi 0, %s28
    %s17 = sphi 0, %s24
    %s18 = sphi 0, %s16
    %s19 = sphi 0, %s17
    %s20 = sphi 0, %s18
    %s21 = sphi 0, %s19
    %s31 = sphi 0, %s33
    %s34 = sphi 0, %s31
    %s35 = sphi 0, %s34
    %s51 = sphi 0, %s35
    %s57 = sphi 0, %s59
    %s60 = sphi 0, %s57
    %s61 = sphi 0, %s60
    %s77 = sphi 0, %s61
    %s83 = sphi 0, %s85
    %s86 = sphi 0, %s83
    %s87 = sphi 0, %s86
    %s103 = sphi 0, %s87
    %s111 = sphi 0, %s113
    %s114 = sphi 0, %s111
    %s115 = sphi 0, %s114
    %s131 = sphi 0, %s115
  $region4: #{patchgan_forward.2} parent=0 // loop_header_branch
    %12 = sbr.rel (%p10) target = $region8
  $region5: #{patchgan_forward.2} parent=0 // loop_body
    %s14 = ssub.s32 %s9, 1
    %s15 = ssub.s32 %s9, 2
    %s22 = sadd.s32 1, %s17
    %p23 = scmp.ge.s32.totalorder %s22, 1
    %s24 = scalar_select %p23, 0, %s22
    %s25 = sadd.s32 1, %s16
    %s26 = scalar_select %p23, %s25, %s16
    %p27 = scmp.ge.s32.totalorder %s26, 2
    %s28 = scalar_select %p27, 0, %s26
    %s29 = ssub.s32 %s16, %s28
    %p30 = scmp.eq.s32.totalorder %s29, 0
    %s32 = sadd.s32 %s31, 1
    %s33 = scalar_select %p30, %s31, %s32
    %p36 = pneg %p30
    %p37 = scmp.eq.s32.totalorder %s9, 1
    %p38 = por %p36, %p37
    %p39 = scmp.ne.s32.totalorder %s31, %s34
    %p40 = scmp.eq.s32.totalorder %s9, 0
    %p41 = por %p39, %p40
    %p42 = scmp.ne.s32.totalorder %s31, %s34
    %p43 = scmp.eq.s32.totalorder %s14, 1
    %p44 = por %p42, %p43
    %p45 = scmp.ne.s32.totalorder %s34, %s35
    %p46 = scmp.eq.s32.totalorder %s14, 0
    %p47 = por %p45, %p46
    %p48 = scmp.ne.s32.totalorder %s34, %s35
    %p49 = scmp.eq.s32.totalorder %s15, 1
    %p50 = por %p48, %p49
    %p52 = scmp.ne.s32.totalorder %s35, %s51
    %p53 = scmp.eq.s32.totalorder %s15, 0
    %p54 = por %p52, %p53
    %s55 = ssub.s32 %s17, %s24
    %p56 = scmp.eq.s32.totalorder %s55, 0
    %s58 = sadd.s32 %s57, 1
    %s59 = scalar_select %p56, %s57, %s58
    %p62 = pneg %p56
    %p63 = scmp.eq.s32.totalorder %s9, 1
    %p64 = por %p62, %p63
    %p65 = scmp.ne.s32.totalorder %s57, %s60
    %p66 = scmp.eq.s32.totalorder %s9, 0
    %p67 = por %p65, %p66
    %p68 = scmp.ne.s32.totalorder %s57, %s60
    %p69 = scmp.eq.s32.totalorder %s14, 1
    %p70 = por %p68, %p69
    %p71 = scmp.ne.s32.totalorder %s60, %s61
    %p72 = scmp.eq.s32.totalorder %s14, 0
    %p73 = por %p71, %p72
    %p74 = scmp.ne.s32.totalorder %s60, %s61
    %p75 = scmp.eq.s32.totalorder %s15, 1
    %p76 = por %p74, %p75
    %p78 = scmp.ne.s32.totalorder %s61, %s77
    %p79 = scmp.eq.s32.totalorder %s15, 0
    %p80 = por %p78, %p79
    %s81 = ssub.s32 %s17, %s24
    %p82 = scmp.eq.s32.totalorder %s81, 0
    %s84 = sadd.s32 %s83, 1
    %s85 = scalar_select %p82, %s83, %s84
    %p88 = pneg %p82
    %p89 = scmp.eq.s32.totalorder %s9, 1
    %p90 = por %p88, %p89
    %p91 = scmp.ne.s32.totalorder %s83, %s86
    %p92 = scmp.eq.s32.totalorder %s9, 0
    %p93 = por %p91, %p92
    %p94 = scmp.ne.s32.totalorder %s83, %s86
    %p95 = scmp.eq.s32.totalorder %s14, 1
    %p96 = por %p94, %p95
    %p97 = scmp.ne.s32.totalorder %s86, %s87
    %p98 = scmp.eq.s32.totalorder %s14, 0
    %p99 = por %p97, %p98
    %p100 = scmp.ne.s32.totalorder %s86, %s87
    %p101 = scmp.eq.s32.totalorder %s15, 1
    %p102 = por %p100, %p101
    %p104 = scmp.ne.s32.totalorder %s87, %s103
    %p105 = scmp.eq.s32.totalorder %s15, 0
    %p106 = por %p104, %p105
    %s107 = ssub.s32 %s16, %s28
    %s108 = ssub.s32 %s17, %s24
    %s109 = sor.u32 %s107, %s108
    %p110 = scmp.eq.s32.totalorder %s109, 0
    %s112 = sadd.s32 %s111, 1
    %s113 = scalar_select %p110, %s111, %s112
    %p116 = pneg %p110
    %p117 = scmp.eq.s32.totalorder %s9, 1
    %p118 = por %p116, %p117
    %p119 = scmp.ne.s32.totalorder %s111, %s114
    %p120 = scmp.eq.s32.totalorder %s9, 0
    %p121 = por %p119, %p120
    %p122 = scmp.ne.s32.totalorder %s111, %s114
    %p123 = scmp.eq.s32.totalorder %s14, 1
    %p124 = por %p122, %p123
    %p125 = scmp.ne.s32.totalorder %s114, %s115
    %p126 = scmp.eq.s32.totalorder %s14, 0
    %p127 = por %p125, %p126
    %p128 = scmp.ne.s32.totalorder %s114, %s115
    %p129 = scmp.eq.s32.totalorder %s15, 1
    %p130 = por %p128, %p129
    %p132 = scmp.ne.s32.totalorder %s115, %s131
    %p133 = scmp.eq.s32.totalorder %s15, 0
    %p134 = por %p132, %p133
    %p135 = scmp.le.s32.totalorder 1, %s9
    %p136 = scmp.lt.s32.totalorder %s9, 3
    %p137 = pnand %p135, %p136
    %p138 = pneg %p137
    // Predicated region
    $region9: #{patchgan_forward.2} parent=5 // pred_check
      _
    $region10: #{patchgan_forward.2} parent=5 // pred_check_branch
      %140 = sbr.rel (%p137) target = $region12
    $region11: #{patchgan_forward.2} parent=5 // pred_region
      %s141 = ssub.s32 %s9, 1
      // Predicated region
      $region13: #{patchgan_forward.2} parent=11 // pred_check
        %p142 = pneg %p73
      $region14: #{patchgan_forward.2} parent=11 // pred_check_branch
        %144 = sbr.rel (%p142) target = $region16
      $region15: #{patchgan_forward.2} parent=11 // pred_region
        %p145 = scmp.lt.s32.totalorder %s19, 0
        %s146 = scalar_select %p145, %s19, 0
        %s147 = smul.addr %s146, 4
        %s148 = scalar_lea.vmem %s1, %s147
      $region16: #{patchgan_forward.2} parent=11 // pred_fallthru
        _
      // Predicated region
      $region17: #{patchgan_forward.2} parent=11 // pred_check
        %p149 = pneg %p99
      $region18: #{patchgan_forward.2} parent=11 // pred_check_branch
        %151 = sbr.rel (%p149) target = $region20
      $region19: #{patchgan_forward.2} parent=11 // pred_region
        %p152 = scmp.lt.s32.totalorder %s19, 0
        %s153 = scalar_select %p152, %s19, 0
        %s154 = scalar_lea.vmem %s2, %s153
      $region20: #{patchgan_forward.2} parent=11 // pred_fallthru
        _
    $region12: #{patchgan_forward.2} parent=5 // pred_fallthru
      _
    %p155 = scmp.lt.s32.totalorder %s9, 2
    // Predicated region
    $region21: #{patchgan_forward.2} parent=5 // pred_check
      %p156 = pneg %p155
    $region22: #{patchgan_forward.2} parent=5 // pred_check_branch
      %158 = sbr.rel (%p156) target = $region24
    $region23: #{patchgan_forward.2} parent=5 // pred_region
      // Predicated region
      $region25: #{patchgan_forward.2} parent=23 // pred_check
        %p159 = pneg %p41
      $region26: #{patchgan_forward.2} parent=23 // pred_check_branch
        %161 = sbr.rel (%p159) target = $region28
      $region27: #{patchgan_forward.2} parent=23 // pred_region
        %s162 = smul.u32 8, %s16
        %p163 = scmp.lt.s32.totalorder %s162, 15
        %s164 = scalar_select %p163, %s162, 15
        %s165 = smul.addr %s164, 4
        %s166 = scalar_lea.vmem %s0, %s165
        %s167 = smul.u32 8, %s16
      $region28: #{patchgan_forward.2} parent=23 // pred_fallthru
        _
    $region24: #{patchgan_forward.2} parent=5 // pred_fallthru
      _
    %p168 = scmp.le.s32.totalorder 1, %s9
    %p169 = scmp.lt.s32.totalorder %s9, 3
    %p170 = pnand %p168, %p169
    %p171 = pneg %p170
    // Predicated region
    $region29: #{patchgan_forward.2} parent=5 // pred_check
      _
    $region30: #{patchgan_forward.2} parent=5 // pred_check_branch
      %173 = sbr.rel (%p170) target = $region32
    $region31: #{patchgan_forward.2} parent=5 // pred_region
      %s174 = ssub.s32 %s9, 1
      %s175 = smul.u32 8, %s18
      %p176 = scmp.lt.s32.totalorder %s175, 15
      %s177 = scalar_select %p176, %s175, 15
      %s178 = smul.addr %s177, 4
      %s179 = scalar_lea.vmem %s0, %s178
      %p180 = pneg %p47
      %p181 = pneg %p44
      %p182 = scmp.lt.s32.totalorder %s19, 0
      %s183 = scalar_select %p182, %s19, 0
      %s184 = smul.addr %s183, 4
      %s185 = scalar_lea.vmem %s1, %s184
      %p186 = pneg %p73
      %p187 = pneg %p70
      %p188 = scmp.lt.s32.totalorder %s19, 0
      %s189 = scalar_select %p188, %s19, 0
      %s190 = scalar_lea.vmem %s2, %s189
      %p191 = pneg %p99
      %p192 = pneg %p96
      %p193 = pneg %p127
      %p194 = pneg %p124
      %s195 = smul.u32 8, %s18
      %p196 = scmp.lt.s32.totalorder %s195, 15
      %s197 = scalar_select %p196, %s195, 15
      %p198 = scmp.lt.s32.totalorder %s19, 0
      %s199 = scalar_select %p198, %s19, 0
      %s200 = sadd.s32 %s199, %s197
      %s201 = smul.addr %s200, 4
      %s202 = scalar_lea.vmem %s3, %s201
      %s203 = smul.u32 8, %s18
      %p204 = scmp.lt.s32.totalorder %s203, 15
      %s205 = scalar_select %p204, %s203, 15
      %s206 = smul.addr %s205, 4
      %s207 = scalar_lea.vmem %s0, %s206
      %s208 = smul.u32 8, %s18
      %p209 = scmp.lt.s32.totalorder %s19, 0
      %s210 = scalar_select %p209, %s19, 0
      %s211 = smul.addr %s210, 4
      %s212 = scalar_lea.vmem %s1, %s211
      %p213 = scmp.lt.s32.totalorder %s19, 0
      %s214 = scalar_select %p213, %s19, 0
      %s215 = scalar_lea.vmem %s2, %s214
      %s216 = smul.u32 8, %s18
      %p217 = scmp.lt.s32.totalorder %s216, 15
      %s218 = scalar_select %p217, %s216, 15
      %p219 = scmp.lt.s32.totalorder %s19, 0
      %s220 = scalar_select %p219, %s19, 0
      %s221 = sadd.s32 %s220, %s218
      %s222 = smul.addr %s221, 4
      %s223 = scalar_lea.vmem %s3, %s222
      %s224 = smul.u32 8, %s18
      %v226 = vld [vmem:[%s207] sm:$0xf]
      %v227 = vld [vmem:[%s207 + $0x4] sm:$0xf]
      %v228 = vld [vmem:[%s207 + $0x8] sm:$0xf]
      %v229 = vld [vmem:[%s207 + $0xc] sm:$0xf]
      %v230 = vld [vmem:[%s207 + $0x10] sm:$0xf]
      %v231 = vld [vmem:[%s207 + $0x14] sm:$0xf]
      %v232 = vld [vmem:[%s207 + $0x18] sm:$0xf]
      %v233 = vld [vmem:[%s207 + $0x1c] sm:$0xf]
      %v234 = vld [vmem:[%s212] sm:$0xf]
      %v235 = vld [vmem:[%s212 + $0x4] sm:$0xf]
      %v236 = vld [vmem:[%s212 + $0x8] sm:$0xf]
      %v237 = vld [vmem:[%s212 + $0xc] sm:$0xf]
      %v238 = vld [vmem:[%s212 + $0x10] sm:$0xf]
      %v239 = vld [vmem:[%s212 + $0x14] sm:$0xf]
      %v240 = vld [vmem:[%s212 + $0x18] sm:$0xf]
      %v241 = vld [vmem:[%s212 + $0x1c] sm:$0xf]
      %v242 = vld [vmem:[%s212 + $0x20] sm:$0xf]
      %v243 = vld [vmem:[%s212 + $0x24] sm:$0xf]
      %v244 = vld [vmem:[%s212 + $0x28] sm:$0xf]
      %v245 = vld [vmem:[%s212 + $0x2c] sm:$0xf]
      %v246 = vld [vmem:[%s212 + $0x30] sm:$0xf]
      %v247 = vld [vmem:[%s212 + $0x34] sm:$0xf]
      %v248 = vld [vmem:[%s212 + $0x38] sm:$0xf]
      %v249 = vld [vmem:[%s212 + $0x3c] sm:$0xf]
      %v250 = vld [vmem:[%s215] sm:$0x1]
      %v252 = vlaneseq
      %v253 = vshrl.u32 %v252, 7
      %v254 = vsub.s32 0, %v253
      %v255 = vrot.slane %v250, %v254
      %v265 = vunpack.c.l.b16 %v226
      %v266 = vunpack.c.l.b16 %v227
      %v267 = vunpack.c.l.b16 %v228
      %v268 = vunpack.c.l.b16 %v229
      %v269 = vunpack.c.l.b16 %v230
      %v270 = vunpack.c.l.b16 %v231
      %v271 = vunpack.c.l.b16 %v232
      %v272 = vunpack.c.l.b16 %v233
      %v273 = vpack.c.b16 %v266, %v265
      %v274 = vpack.c.b16 %v268, %v267
      %v275 = vpack.c.b16 %v270, %v269
      %v276 = vpack.c.b16 %v272, %v271
      %v297 = vunpack.c.l.b16 %v234
      %v298 = vunpack.c.l.b16 %v235
      %v299 = vunpack.c.l.b16 %v236
      %v300 = vunpack.c.l.b16 %v237
      %v301 = vunpack.c.l.b16 %v238
      %v302 = vunpack.c.l.b16 %v239
      %v303 = vunpack.c.l.b16 %v240
      %v304 = vunpack.c.l.b16 %v241
      %v305 = vunpack.c.l.b16 %v242
      %v306 = vunpack.c.l.b16 %v243
      %v307 = vunpack.c.l.b16 %v244
      %v308 = vunpack.c.l.b16 %v245
      %v309 = vunpack.c.l.b16 %v246
      %v310 = vunpack.c.l.b16 %v247
      %v311 = vunpack.c.l.b16 %v248
      %v312 = vunpack.c.l.b16 %v249
      %v313 = vpack.c.b16 %v298, %v297
      %v314 = vpack.c.b16 %v300, %v299
      %v315 = vpack.c.b16 %v302, %v301
      %v316 = vpack.c.b16 %v304, %v303
      %v317 = vpack.c.b16 %v306, %v305
      %v318 = vpack.c.b16 %v308, %v307
      %v319 = vpack.c.b16 %v310, %v309
      %v320 = vpack.c.b16 %v312, %v311
      %329 = vmatprep.subr.bf16.mxu0 0
      %330 = vmatpush1.bf16.msra.mxu0 %v313
      %331 = vmatprep.subr.bf16.mxu0 0
      %332 = vmatpush1.bf16.msra.mxu0 %v314
      %333 = vmatprep.subr.bf16.mxu0 0
      %334 = vmatpush1.bf16.msra.mxu0 %v315
      %335 = vmatprep.subr.bf16.mxu0 0
      %336 = vmatpush1.bf16.msra.mxu0 %v316
      %337 = vmatprep.subr.bf16.mxu0 0
      %338 = vmatpush1.bf16.msra.mxu0 %v317
      %339 = vmatprep.subr.bf16.mxu0 0
      %340 = vmatpush1.bf16.msra.mxu0 %v318
      %341 = vmatprep.subr.bf16.mxu0 0
      %342 = vmatpush1.bf16.msra.mxu0 %v319
      %343 = vmatprep.subr.bf16.mxu0 0
      %344 = vmatpush1.bf16.msra.mxu0 %v320
      %345 = vmatprep.subr.bf16.mxu0 0
      %346 = vmatpush1.bf16.msra.mxu0 0
      %347 = vmatprep.subr.bf16.mxu0 0
      %348 = vmatpush1.bf16.msra.mxu0 0
      %349 = vmatprep.subr.bf16.mxu0 0
      %350 = vmatpush1.bf16.msra.mxu0 0
      %351 = vmatprep.subr.bf16.mxu0 0
      %352 = vmatpush1.bf16.msra.mxu0 0
      %353 = vmatprep.subr.bf16.mxu0 0
      %354 = vmatpush1.bf16.msra.mxu0 0
      %355 = vmatprep.subr.bf16.mxu0 0
      %356 = vmatpush1.bf16.msra.mxu0 0
      %357 = vmatprep.subr.bf16.mxu0 0
      %358 = vmatpush1.bf16.msra.mxu0 0
      %359 = vmatprep.subr.bf16.mxu0 0
      %360 = vmatpush1.bf16.msra.mxu0 0
      %361 = vmatprep.mubr.bf16.mxu0 0
      %362 = vmatmul.mubr.bf16.gmra.mrb[0].mxu0 %v273
      %v363 = vpop.f32.mrb[0].mxu0
      %v364 = vadd.f32 %v255, %v363
      %v365 = vpop.f32.mrb[0].mxu0
      %v366 = vpop.f32.mrb[0].mxu0
      %v367 = vadd.f32 %v255, %v366
      %v368 = vpop.f32.mrb[0].mxu0
      %369 = vmatprep.mubr.bf16.mxu0 0
      %370 = vmatmul.mubr.bf16.gmra.mrb[0].mxu0 %v274
      %v371 = vpop.f32.mrb[0].mxu0
      %v372 = vadd.f32 %v255, %v371
      %v373 = vpop.f32.mrb[0].mxu0
      %v374 = vpop.f32.mrb[0].mxu0
      %v375 = vadd.f32 %v255, %v374
      %v376 = vpop.f32.mrb[0].mxu0
      %377 = vmatprep.mubr.bf16.mxu0 0
      %378 = vmatmul.mubr.bf16.gmra.mrb[0].mxu0 %v275
      %v379 = vpop.f32.mrb[0].mxu0
      %v380 = vadd.f32 %v255, %v379
      %v381 = vpop.f32.mrb[0].mxu0
      %v382 = vpop.f32.mrb[0].mxu0
      %v383 = vadd.f32 %v255, %v382
      %v384 = vpop.f32.mrb[0].mxu0
      %385 = vmatprep.mubr.bf16.mxu0 0
      %386 = vmatmul.mubr.bf16.gmra.mrb[0].mxu0 %v276
      %v387 = vpop.f32.mrb[0].mxu0
      %v388 = vadd.f32 %v255, %v387
      %v389 = vpop.f32.mrb[0].mxu0
      %v390 = vpop.f32.mrb[0].mxu0
      %v391 = vadd.f32 %v255, %v390
      %v392 = vpop.f32.mrb[0].mxu0
      %393 = vdwg.mxu0
      %vm394 = vcmp.ge.f32.partialorder %v364, 0.0
      %vm395 = vcmp.ge.f32.partialorder %v367, 0.0
      %vm396 = vcmp.ge.f32.partialorder %v372, 0.0
      %vm397 = vcmp.ge.f32.partialorder %v375, 0.0
      %vm398 = vcmp.ge.f32.partialorder %v380, 0.0
      %vm399 = vcmp.ge.f32.partialorder %v383, 0.0
      %vm400 = vcmp.ge.f32.partialorder %v388, 0.0
      %vm401 = vcmp.ge.f32.partialorder %v391, 0.0
      %v402 = vmul.f32 %v364, 0.2
      %v403 = vmul.f32 %v367, 0.2
      %v404 = vmul.f32 %v372, 0.2
      %v405 = vmul.f32 %v375, 0.2
      %v406 = vmul.f32 %v380, 0.2
      %v407 = vmul.f32 %v383, 0.2
      %v408 = vmul.f32 %v388, 0.2
      %v409 = vmul.f32 %v391, 0.2
      %v410 = vsel %vm394, %v364, %v402
      %v411 = vsel %vm395, %v367, %v403
      %v412 = vsel %vm396, %v372, %v404
      %v413 = vsel %vm397, %v375, %v405
      %v414 = vsel %vm398, %v380, %v406
      %v415 = vsel %vm399, %v383, %v407
      %v416 = vsel %vm400, %v388, %v408
      %v417 = vsel %vm401, %v391, %v409
      %v418 = vpack.c.bf16 %v411, %v410
      %v419 = vpack.c.bf16 %v413, %v412
      %v420 = vpack.c.bf16 %v415, %v414
      %v421 = vpack.c.bf16 %v417, %v416
      %v426 = vunpack.c.l.b16 %v418
      %v427 = vunpack.c.h.b16 %v418
      %v428 = vunpack.c.l.b16 %v419
      %v429 = vunpack.c.h.b16 %v419
      %v430 = vunpack.c.l.b16 %v420
      %v431 = vunpack.c.h.b16 %v420
      %v432 = vunpack.c.l.b16 %v421
      %v433 = vunpack.c.h.b16 %v421
      %v434 = vpack.c.b16 %v426, %v426
      %v435 = vpack.c.b16 %v427, %v427
      %v436 = vpack.c.b16 %v428, %v428
      %v437 = vpack.c.b16 %v429, %v429
      %v438 = vpack.c.b16 %v430, %v430
      %v439 = vpack.c.b16 %v431, %v431
      %v440 = vpack.c.b16 %v432, %v432
      %v441 = vpack.c.b16 %v433, %v433
      %450 = vst [vmem:[%s223] sm:$0xf] %v434
      %451 = vst [vmem:[%s223 + $0x4] sm:$0xf] %v435
      %452 = vst [vmem:[%s223 + $0x8] sm:$0xf] %v436
      %453 = vst [vmem:[%s223 + $0xc] sm:$0xf] %v437
      %454 = vst [vmem:[%s223 + $0x10] sm:$0xf] %v438
      %455 = vst [vmem:[%s223 + $0x14] sm:$0xf] %v439
      %456 = vst [vmem:[%s223 + $0x18] sm:$0xf] %v440
      %457 = vst [vmem:[%s223 + $0x1c] sm:$0xf] %v441
      %s458 = smul.u32 8, %s18
      %p459 = scmp.lt.s32.totalorder %s458, 15
      %s460 = scalar_select %p459, %s458, 15
      %p461 = scmp.lt.s32.totalorder %s19, 0
      %s462 = scalar_select %p461, %s19, 0
      %s463 = sadd.s32 %s462, %s460
      %s464 = smul.addr %s463, 4
      %s465 = scalar_lea.vmem %s3, %s464
      // Predicated region
      $region33: #{patchgan_forward.2} parent=31 // pred_check
        %p466 = pneg %p124
      $region34: #{patchgan_forward.2} parent=31 // pred_check_branch
        %468 = sbr.rel (%p466) target = $region36
      $region35: #{patchgan_forward.2} parent=31 // pred_region
        %s469 = smul.u32 8, %s18
      $region36: #{patchgan_forward.2} parent=31 // pred_fallthru
        _
    $region32: #{patchgan_forward.2} parent=5 // pred_fallthru
      _
    %p470 = scmp.le.s32.totalorder 2, %s9
    // Predicated region
    $region37: #{patchgan_forward.2} parent=5 // pred_check
      %p471 = pneg %p470
    $region38: #{patchgan_forward.2} parent=5 // pred_check_branch
      %473 = sbr.rel (%p471) target = $region40
    $region39: #{patchgan_forward.2} parent=5 // pred_region
      %s474 = ssub.s32 %s9, 2
      // Predicated region
      $region41: #{patchgan_forward.2} parent=39 // pred_check
        %p475 = pneg %p130
      $region42: #{patchgan_forward.2} parent=39 // pred_check_branch
        %477 = sbr.rel (%p475) target = $region44
      $region43: #{patchgan_forward.2} parent=39 // pred_region
        %s478 = smul.u32 8, %s20
        %p479 = scmp.lt.s32.totalorder %s478, 15
        %s480 = scalar_select %p479, %s478, 15
        %p481 = scmp.lt.s32.totalorder %s21, 0
        %s482 = scalar_select %p481, %s21, 0
        %s483 = sadd.s32 %s482, %s480
        %s484 = smul.addr %s483, 4
        %s485 = scalar_lea.vmem %s3, %s484
      $region44: #{patchgan_forward.2} parent=39 // pred_fallthru
        _
    $region40: #{patchgan_forward.2} parent=5 // pred_fallthru
      _
  $region6: #{patchgan_forward.2} parent=0 // loop_footer
    %s13 = sadd.s32 1, %s9
  $region7: #{patchgan_forward.2} parent=0 // loop_footer_branch
    %8 = sbr.rel target = $region3
  $region8: #{patchgan_forward.2} parent=0 // loop_exit
    _

// kernel: patchgan_forward.3
$region0: #{patchgan_forward.3}
  #allocation0 [shape = 'u32[]', space=smem, size = 0x4, offset = 0x4, fixed_abs, tag = 'smem constant byte address 0x4 - core index']
  #allocation1 [shape = 'u32[144,128]{1,0:T(1,128)}', space=vmem, size = 0x12000, scoped, tag = 'internal scratch']
  #allocation2 [shape = 'f32[16,128]{1,0:T(8,128)}', space=vmem, size = 0x2000, scoped, tag = 'scratch operand']
  %s0 = inlined_call_operand.vmem [shape: bf16[32,2048], index: 0, kind: input, shape index: {}]
  %s1 = inlined_call_operand.vmem [shape: bf16[2048,128], index: 1, kind: input, shape index: {}]
  %s2 = inlined_call_operand.vmem [shape: f32[1,128], index: 2, kind: input, shape index: {}]
  %s3 = inlined_call_operand.vmem [shape: bf16[32,128], index: 3, kind: output, shape index: {}]
  %s4 = sld [smem:[#allocation0]]
  $region76: #{patchgan_forward.3} parent=0
    _
  %s6 = ssub.s32 1, %s4
  %s7 = scalar_select 0, %s6, %s4
  $region1: #{patchgan_forward.3} parent=0
    #allocation3 [shape = 'u8[65536]{0}', space=vmem, size = 0x10000, scoped, tag = 'input window, operand 0']
    loop: start=0, step=1, limit=6
    $region2: #{patchgan_forward.3} parent=1 // loop_pre_header
      _
    $region3: #{patchgan_forward.3} parent=1 // loop_header
      %s9 = sphi 0, %s13
      %p10 = scmp.ge.s32.totalorder %s9, 6
      %s16 = sphi 0, %s35
      %s17 = sphi 0, %s31
      %s18 = sphi 0, %s27
      %s19 = sphi 0, %s16
      %s20 = sphi 0, %s17
      %s21 = sphi 0, %s18
      %s22 = sphi 0, %s19
      %s23 = sphi 0, %s20
      %s24 = sphi 0, %s21
      %s40 = sphi 0, %s42
      %s43 = sphi 0, %s40
      %s44 = sphi 0, %s43
      %s60 = sphi 0, %s44
      %s68 = sphi 0, %s70
      %s71 = sphi 0, %s68
      %s72 = sphi 0, %s71
      %s88 = sphi 0, %s72
      %s94 = sphi 0, %s96
      %s97 = sphi 0, %s94
      %s98 = sphi 0, %s97
      %s114 = sphi 0, %s98
      %s122 = sphi 0, %s124
      %s125 = sphi 0, %s122
      %s126 = sphi 0, %s125
      %s142 = sphi 0, %s126
    $region4: #{patchgan_forward.3} parent=1 // loop_header_branch
      %12 = sbr.rel (%p10) target = $region8
    $region5: #{patchgan_forward.3} parent=1 // loop_body
      %s14 = ssub.s32 %s9, 1
      %s15 = ssub.s32 %s9, 2
      %s25 = sadd.s32 1, %s18
      %p26 = scmp.ge.s32.totalorder %s25, 2
      %s27 = scalar_select %p26, 0, %s25
      %s28 = sadd.s32 1, %s17
      %s29 = scalar_select %p26, %s28, %s17
      %p30 = scmp.ge.s32.totalorder %s29, 1
      %s31 = scalar_select %p30, 0, %s29
      %s32 = sadd.s32 1, %s16
      %s33 = scalar_select %p30, %s32, %s16
      %p34 = scmp.ge.s32.totalorder %s33, 2
      %s35 = scalar_select %p34, 0, %s33
      %s36 = ssub.s32 %s16, %s35
      %s37 = ssub.s32 %s18, %s27
      %s38 = sor.u32 %s36, %s37
      %p39 = scmp.eq.s32.totalorder %s38, 0
      %s41 = sadd.s32 %s40, 1
      %s42 = scalar_select %p39, %s40, %s41
      %p45 = pneg %p39
      %p46 = scmp.eq.s32.totalorder %s9, 3
      %p47 = por %p45, %p46
      %p48 = scmp.ne.s32.totalorder %s40, %s43
      %p49 = scmp.eq.s32.totalorder %s9, 0
      %p50 = por %p48, %p49
      %p51 = scmp.ne.s32.totalorder %s40, %s43
      %p52 = scmp.eq.s32.totalorder %s14, 3
      %p53 = por %p51, %p52
      %p54 = scmp.ne.s32.totalorder %s43, %s44
      %p55 = scmp.eq.s32.totalorder %s14, 0
      %p56 = por %p54, %p55
      %p57 = scmp.ne.s32.totalorder %s43, %s44
      %p58 = scmp.eq.s32.totalorder %s15, 3
      %p59 = por %p57, %p58
      %p61 = scmp.ne.s32.totalorder %s44, %s60
      %p62 = scmp.eq.s32.totalorder %s15, 0
      %p63 = por %p61, %p62
      %s64 = ssub.s32 %s18, %s27
      %s65 = ssub.s32 %s17, %s31
      %s66 = sor.u32 %s64, %s65
      %p67 = scmp.eq.s32.totalorder %s66, 0
      %s69 = sadd.s32 %s68, 1
      %s70 = scalar_select %p67, %s68, %s69
      %p73 = pneg %p67
      %p74 = scmp.eq.s32.totalorder %s9, 3
      %p75 = por %p73, %p74
      %p76 = scmp.ne.s32.totalorder %s68, %s71
      %p77 = scmp.eq.s32.totalorder %s9, 0
      %p78 = por %p76, %p77
      %p79 = scmp.ne.s32.totalorder %s68, %s71
      %p80 = scmp.eq.s32.totalorder %s14, 3
      %p81 = por %p79, %p80
      %p82 = scmp.ne.s32.totalorder %s71, %s72
      %p83 = scmp.eq.s32.totalorder %s14, 0
      %p84 = por %p82, %p83
      %p85 = scmp.ne.s32.totalorder %s71, %s72
      %p86 = scmp.eq.s32.totalorder %s15, 3
      %p87 = por %p85, %p86
      %p89 = scmp.ne.s32.totalorder %s72, %s88
      %p90 = scmp.eq.s32.totalorder %s15, 0
      %p91 = por %p89, %p90
      %s92 = ssub.s32 %s17, %s31
      %p93 = scmp.eq.s32.totalorder %s92, 0
      %s95 = sadd.s32 %s94, 1
      %s96 = scalar_select %p93, %s94, %s95
      %p99 = pneg %p93
      %p100 = scmp.eq.s32.totalorder %s9, 3
      %p101 = por %p99, %p100
      %p102 = scmp.ne.s32.totalorder %s94, %s97
      %p103 = scmp.eq.s32.totalorder %s9, 0
      %p104 = por %p102, %p103
      %p105 = scmp.ne.s32.totalorder %s94, %s97
      %p106 = scmp.eq.s32.totalorder %s14, 3
      %p107 = por %p105, %p106
      %p108 = scmp.ne.s32.totalorder %s97, %s98
      %p109 = scmp.eq.s32.totalorder %s14, 0
      %p110 = por %p108, %p109
      %p111 = scmp.ne.s32.totalorder %s97, %s98
      %p112 = scmp.eq.s32.totalorder %s15, 3
      %p113 = por %p111, %p112
      %p115 = scmp.ne.s32.totalorder %s98, %s114
      %p116 = scmp.eq.s32.totalorder %s15, 0
      %p117 = por %p115, %p116
      %s118 = ssub.s32 %s16, %s35
      %s119 = ssub.s32 %s17, %s31
      %s120 = sor.u32 %s118, %s119
      %p121 = scmp.eq.s32.totalorder %s120, 0
      %s123 = sadd.s32 %s122, 1
      %s124 = scalar_select %p121, %s122, %s123
      %p127 = pneg %p121
      %p128 = scmp.eq.s32.totalorder %s9, 3
      %p129 = por %p127, %p128
      %p130 = scmp.ne.s32.totalorder %s122, %s125
      %p131 = scmp.eq.s32.totalorder %s9, 0
      %p132 = por %p130, %p131
      %p133 = scmp.ne.s32.totalorder %s122, %s125
      %p134 = scmp.eq.s32.totalorder %s14, 3
      %p135 = por %p133, %p134
      %p136 = scmp.ne.s32.totalorder %s125, %s126
      %p137 = scmp.eq.s32.totalorder %s14, 0
      %p138 = por %p136, %p137
      %p139 = scmp.ne.s32.totalorder %s125, %s126
      %p140 = scmp.eq.s32.totalorder %s15, 3
      %p141 = por %p139, %p140
      %p143 = scmp.ne.s32.totalorder %s126, %s142
      %p144 = scmp.eq.s32.totalorder %s15, 0
      %p145 = por %p143, %p144
      %p146 = scmp.le.s32.totalorder 1, %s9
      %p147 = scmp.lt.s32.totalorder %s9, 5
      %p148 = pnand %p146, %p147
      %p149 = pneg %p148
      // Predicated region
      $region9: #{patchgan_forward.3} parent=5 // pred_check
        _
      $region10: #{patchgan_forward.3} parent=5 // pred_check_branch
        %151 = sbr.rel (%p148) target = $region12
      $region11: #{patchgan_forward.3} parent=5 // pred_region
        %s152 = ssub.s32 %s9, 1
        // Predicated region
        $region13: #{patchgan_forward.3} parent=11 // pred_check
          %p153 = pneg %p110
        $region14: #{patchgan_forward.3} parent=11 // pred_check_branch
          %155 = sbr.rel (%p153) target = $region16
        $region15: #{patchgan_forward.3} parent=11 // pred_region
          %p156 = scmp.lt.s32.totalorder %s20, 0
          %s157 = scalar_select %p156, %s20, 0
          %s158 = scalar_lea.vmem %s2, %s157
        $region16: #{patchgan_forward.3} parent=11 // pred_fallthru
          _
      $region12: #{patchgan_forward.3} parent=5 // pred_fallthru
        _
      %p159 = scmp.lt.s32.totalorder %s9, 4
      // Predicated region
      $region17: #{patchgan_forward.3} parent=5 // pred_check
        %p160 = pneg %p159
      $region18: #{patchgan_forward.3} parent=5 // pred_check_branch
        %162 = sbr.rel (%p160) target = $region20
      $region19: #{patchgan_forward.3} parent=5 // pred_region
        // Predicated region
        $region21: #{patchgan_forward.3} parent=19 // pred_check
          %p163 = pneg %p50
        $region22: #{patchgan_forward.3} parent=19 // pred_check_branch
          %165 = sbr.rel (%p163) target = $region24
        $region23: #{patchgan_forward.3} parent=19 // pred_region
          %s166 = sand.u32 %s40, 1
          %s167 = sand.u32 %s40, 1
          %s168 = smul.addr %s167, 64
          %s169 = scalar_lea.vmem [#allocation3], %s168
          %s170 = smul.u32 2, %s16
          %s171 = smul.u32 8, %s18
          %s172 = smul.addr %s170, 16
          %s173 = sadd.s32 %s171, %s172
          %s174 = smul.addr %s173, 4
          %s175 = scalar_lea.vmem %s0, %s174
          // Predicated region
          $region25: #{patchgan_forward.3} parent=23 // pred_check
            _
          $region26: #{patchgan_forward.3} parent=23 // pred_check_branch
            %177 = sbr.rel (0) target = $region28
          $region27: #{patchgan_forward.3} parent=23 // pred_region
            // Predicated region
            $region29: #{patchgan_forward.3} parent=27 // pred_check
              _
            $region30: #{patchgan_forward.3} parent=27 // pred_check_branch
              %179 = sbr.rel (0) target = $region32
            $region31: #{patchgan_forward.3} parent=27 // pred_region
              loop: start=0, step=1, limit=1
              $region33: #{patchgan_forward.3} parent=31 // loop_pre_header
                _
              $region34: #{patchgan_forward.3} parent=31 // loop_header
                %s181 = sphi 0, %s185
                %p182 = scmp.ge.s32.totalorder %s181, 1
                %s186 = sphi %s175, %s175
                %s187 = sphi %s169, %s169
              $region35: #{patchgan_forward.3} parent=31 // loop_header_branch
                %184 = sbr.rel (%p182) target = $region39
              $region36: #{patchgan_forward.3} parent=31 // loop_body
                %v188 = vld [vmem:[%s186] sm:$0xff]
                %189 = vst [vmem:[%s187] sm:$0xff] %v188
                %v190 = vld [vmem:[%s186 + $0x8] sm:$0xff]
                %191 = vst [vmem:[%s187 + $0x8] sm:$0xff] %v190
                %v192 = vld [vmem:[%s186 + $0x10] sm:$0xff]
                %193 = vst [vmem:[%s187 + $0x10] sm:$0xff] %v192
                %v194 = vld [vmem:[%s186 + $0x18] sm:$0xff]
                %195 = vst [vmem:[%s187 + $0x18] sm:$0xff] %v194
                %v196 = vld [vmem:[%s186 + $0x40] sm:$0xff]
                %197 = vst [vmem:[%s187 + $0x20] sm:$0xff] %v196
                %v198 = vld [vmem:[%s186 + $0x48] sm:$0xff]
                %199 = vst [vmem:[%s187 + $0x28] sm:$0xff] %v198
                %v200 = vld [vmem:[%s186 + $0x50] sm:$0xff]
                %201 = vst [vmem:[%s187 + $0x30] sm:$0xff] %v200
                %v202 = vld [vmem:[%s186 + $0x58] sm:$0xff]
                %203 = vst [vmem:[%s187 + $0x38] sm:$0xff] %v202
              $region37: #{patchgan_forward.3} parent=31 // loop_footer
                %s185 = sadd.s32 1, %s181
              $region38: #{patchgan_forward.3} parent=31 // loop_footer_branch
                %180 = sbr.rel target = $region34
              $region39: #{patchgan_forward.3} parent=31 // loop_exit
                _
            $region32: #{patchgan_forward.3} parent=27 // pred_fallthru
              _
            // Predicated region
            $region40: #{patchgan_forward.3} parent=27 // pred_check
              _
            $region41: #{patchgan_forward.3} parent=27 // pred_check_branch
              %205 = sbr.rel target = $region43
            $region42: #{patchgan_forward.3} parent=27 // pred_region
              _
            $region43: #{patchgan_forward.3} parent=27 // pred_fallthru
              _
          $region28: #{patchgan_forward.3} parent=23 // pred_fallthru
            _
          %206 = vnop
        $region24: #{patchgan_forward.3} parent=19 // pred_fallthru
          _
        // Predicated region
        $region44: #{patchgan_forward.3} parent=19 // pred_check
          %p207 = pneg %p78
        $region45: #{patchgan_forward.3} parent=19 // pred_check_branch
          %209 = sbr.rel (%p207) target = $region47
        $region46: #{patchgan_forward.3} parent=19 // pred_region
          %s210 = smul.u32 128, %s18
          %p211 = scmp.lt.s32.totalorder %s210, 255
          %s212 = scalar_select %p211, %s210, 255
          %p213 = scmp.lt.s32.totalorder %s17, 0
          %s214 = scalar_select %p213, %s17, 0
          %s215 = sadd.s32 %s214, %s212
          %s216 = smul.addr %s215, 4
          %s217 = scalar_lea.vmem %s1, %s216
          %s218 = smul.u32 128, %s18
        $region47: #{patchgan_forward.3} parent=19 // pred_fallthru
          _
      $region20: #{patchgan_forward.3} parent=5 // pred_fallthru
        _
      %p219 = scmp.le.s32.totalorder 1, %s9
      %p220 = scmp.lt.s32.totalorder %s9, 5
      %p221 = pnand %p219, %p220
      %p222 = pneg %p221
      // Predicated region
      $region48: #{patchgan_forward.3} parent=5 // pred_check
        _
      $region49: #{patchgan_forward.3} parent=5 // pred_check_branch
        %224 = sbr.rel (%p221) target = $region51
      $region50: #{patchgan_forward.3} parent=5 // pred_region
        %s225 = ssub.s32 %s9, 1
        %s226 = sand.u32 %s43, 1
        %s227 = sand.u32 %s43, 1
        %s228 = smul.addr %s227, 64
        %s229 = scalar_lea.vmem [#allocation3], %s228
        // Predicated region
        $region52: #{patchgan_forward.3} parent=50 // pred_check
          %p230 = pneg %p56
        $region53: #{patchgan_forward.3} parent=50 // pred_check_branch
          %232 = sbr.rel (%p230) target = $region55
        $region54: #{patchgan_forward.3} parent=50 // pred_region
          _
        $region55: #{patchgan_forward.3} parent=50 // pred_fallthru
          _
        %s233 = sand.u32 %s43, 1
        %s234 = sand.u32 %s43, 1
        %s235 = smul.addr %s234, 64
        %s236 = scalar_lea.vmem [#allocation3], %s235
        %p237 = pneg %p56
        %p238 = pneg %p53
        %s239 = smul.u32 128, %s21
        %p240 = scmp.lt.s32.totalorder %s239, 255
        %s241 = scalar_select %p240, %s239, 255
        %p242 = scmp.lt.s32.totalorder %s20, 0
        %s243 = scalar_select %p242, %s20, 0
        %s244 = sadd.s32 %s243, %s241
        %s245 = smul.addr %s244, 4
        %s246 = scalar_lea.vmem %s1, %s245
        %p247 = pneg %p84
        %p248 = pneg %p81
        %p249 = scmp.lt.s32.totalorder %s20, 0
        %s250 = scalar_select %p249, %s20, 0
        %s251 = scalar_lea.vmem %s2, %s250
        %p252 = pneg %p110
        %p253 = pneg %p107
        %p254 = pneg %p138
        %p255 = pneg %p135
        %s256 = smul.u32 2, %s19
        %p257 = scmp.lt.s32.totalorder %s256, 3
        %s258 = scalar_select %p257, %s256, 3
        %p259 = scmp.lt.s32.totalorder %s20, 0
        %s260 = scalar_select %p259, %s20, 0
        %s261 = sadd.s32 %s260, %s258
        %s262 = smul.addr %s261, 4
        %s263 = scalar_lea.vmem %s3, %s262
        %s264 = smul.u32 2, %s19
        %s265 = smul.u32 8, %s21
        %s266 = smul.u32 128, %s21
        %p267 = scmp.lt.s32.totalorder %s266, 255
        %s268 = scalar_select %p267, %s266, 255
        %p269 = scmp.lt.s32.totalorder %s20, 0
        %s270 = scalar_select %p269, %s20, 0
        %s271 = sadd.s32 %s270, %s268
        %s272 = smul.addr %s271, 4
        %s273 = scalar_lea.vmem %s1, %s272
        %s274 = smul.u32 128, %s21
        %p275 = scmp.lt.s32.totalorder %s20, 0
        %s276 = scalar_select %p275, %s20, 0
        %s277 = scalar_lea.vmem %s2, %s276
        %s278 = smul.u32 2, %s19
        %p279 = scmp.lt.s32.totalorder %s278, 3
        %s280 = scalar_select %p279, %s278, 3
        %p281 = scmp.lt.s32.totalorder %s20, 0
        %s282 = scalar_select %p281, %s20, 0
        %s283 = sadd.s32 %s282, %s280
        %s284 = smul.addr %s283, 4
        %s285 = scalar_lea.vmem %s3, %s284
        %s286 = smul.u32 2, %s19
        %p288 = scmp.eq.s32.totalorder %s21, 0
        // Predicated region
        $region56: #{patchgan_forward.3} parent=50 // pred_check
          %p289 = pneg %p288
        $region57: #{patchgan_forward.3} parent=50 // pred_check_branch
          %291 = sbr.rel (%p289) target = $region59
        $region58: #{patchgan_forward.3} parent=50 // pred_region
          %292 = vst [vmem:[#allocation2] sm:$0xff] 0.0
          %293 = vst [vmem:[#allocation2 + $0x8] sm:$0xff] 0.0
        $region59: #{patchgan_forward.3} parent=50 // pred_fallthru
          _
        %v294 = vld [vmem:[#allocation2] sm:$0xff]
        %v295 = vld [vmem:[#allocation2 + $0x8] sm:$0xff]
        %v296 = vld [vmem:[%s229] sm:$0xff]
        %v297 = vld [vmem:[%s229 + $0x8] sm:$0xff]
        %v298 = vld [vmem:[%s229 + $0x10] sm:$0xff]
        %v299 = vld [vmem:[%s229 + $0x18] sm:$0xff]
        %v300 = vld [vmem:[%s229 + $0x20] sm:$0xff]
        %v301 = vld [vmem:[%s229 + $0x28] sm:$0xff]
        %v302 = vld [vmem:[%s229 + $0x30] sm:$0xff]
        %v303 = vld [vmem:[%s229 + $0x38] sm:$0xff]
        %v304 = vld [vmem:[%s273] sm:$0xf]
        %v305 = vld [vmem:[%s273 + $0x4] sm:$0xf]
        %v306 = vld [vmem:[%s273 + $0x8] sm:$0xf]
        %v307 = vld [vmem:[%s273 + $0xc] sm:$0xf]
        %v308 = vld [vmem:[%s273 + $0x10] sm:$0xf]
        %v309 = vld [vmem:[%s273 + $0x14] sm:$0xf]
        %v310 = vld [vmem:[%s273 + $0x18] sm:$0xf]
        %v311 = vld [vmem:[%s273 + $0x1c] sm:$0xf]
        %v312 = vld [vmem:[%s273 + $0x20] sm:$0xf]
        %v313 = vld [vmem:[%s273 + $0x24] sm:$0xf]
        %v314 = vld [vmem:[%s273 + $0x28] sm:$0xf]
        %v315 = vld [vmem:[%s273 + $0x2c] sm:$0xf]
        %v316 = vld [vmem:[%s273 + $0x30] sm:$0xf]
        %v317 = vld [vmem:[%s273 + $0x34] sm:$0xf]
        %v318 = vld [vmem:[%s273 + $0x38] sm:$0xf]
        %v319 = vld [vmem:[%s273 + $0x3c] sm:$0xf]
        %v320 = vld [vmem:[%s273 + $0x40] sm:$0xf]
        %v321 = vld [vmem:[%s273 + $0x44] sm:$0xf]
        %v322 = vld [vmem:[%s273 + $0x48] sm:$0xf]
        %v323 = vld [vmem:[%s273 + $0x4c] sm:$0xf]
        %v324 = vld [vmem:[%s273 + $0x50] sm:$0xf]
        %v325 = vld [vmem:[%s273 + $0x54] sm:$0xf]
        %v326 = vld [vmem:[%s273 + $0x58] sm:$0xf]
        %v327 = vld [vmem:[%s273 + $0x5c] sm:$0xf]
        %v328 = vld [vmem:[%s273 + $0x60] sm:$0xf]
        %v329 = vld [vmem:[%s273 + $0x64] sm:$0xf]
        %v330 = vld [vmem:[%s273 + $0x68] sm:$0xf]
        %v331 = vld [vmem:[%s273 + $0x6c] sm:$0xf]
        %v332 = vld [vmem:[%s273 + $0x70] sm:$0xf]
        %v333 = vld [vmem:[%s273 + $0x74] sm:$0xf]
        %v334 = vld [vmem:[%s273 + $0x78] sm:$0xf]
        %v335 = vld [vmem:[%s273 + $0x7c] sm:$0xf]
        %v336 = vld [vmem:[%s273 + $0x80] sm:$0xf]
        %v337 = vld [vmem:[%s273 + $0x84] sm:$0xf]
        %v338 = vld [vmem:[%s273 + $0x88] sm:$0xf]
        %v339 = vld [vmem:[%s273 + $0x8c] sm:$0xf]
        %v340 = vld [vmem:[%s273 + $0x90] sm:$0xf]
        %v341 = vld [vmem:[%s273 + $0x94] sm:$0xf]
        %v342 = vld [vmem:[%s273 + $0x98] sm:$0xf]
        %v343 = vld [vmem:[%s273 + $0x9c] sm:$0xf]
        %v344 = vld [vmem:[%s273 + $0xa0] sm:$0xf]
        %v345 = vld [vmem:[%s273 + $0xa4] sm:$0xf]
        %v346 = vld [vmem:[%s273 + $0xa8] sm:$0xf]
        %v347 = vld [vmem:[%s273 + $0xac] sm:$0xf]
        %v348 = vld [vmem:[%s273 + $0xb0] sm:$0xf]
        %v349 = vld [vmem:[%s273 + $0xb4] sm:$0xf]
        %v350 = vld [vmem:[%s273 + $0xb8] sm:$0xf]
        %v351 = vld [vmem:[%s273 + $0xbc] sm:$0xf]
        %v352 = vld [vmem:[%s273 + $0xc0] sm:$0xf]
        %v353 = vld [vmem:[%s273 + $0xc4] sm:$0xf]
        %v354 = vld [vmem:[%s273 + $0xc8] sm:$0xf]
        %v355 = vld [vmem:[%s273 + $0xcc] sm:$0xf]
        %v356 = vld [vmem:[%s273 + $0xd0] sm:$0xf]
        %v357 = vld [vmem:[%s273 + $0xd4] sm:$0xf]
        %v358 = vld [vmem:[%s273 + $0xd8] sm:$0xf]
        %v359 = vld [vmem:[%s273 + $0xdc] sm:$0xf]
        %v360 = vld [vmem:[%s273 + $0xe0] sm:$0xf]
        %v361 = vld [vmem:[%s273 + $0xe4] sm:$0xf]
        %v362 = vld [vmem:[%s273 + $0xe8] sm:$0xf]
        %v363 = vld [vmem:[%s273 + $0xec] sm:$0xf]
        %v364 = vld [vmem:[%s273 + $0xf0] sm:$0xf]
        %v365 = vld [vmem:[%s273 + $0xf4] sm:$0xf]
        %v366 = vld [vmem:[%s273 + $0xf8] sm:$0xf]
        %v367 = vld [vmem:[%s273 + $0xfc] sm:$0xf]
        %v368 = vld [vmem:[%s273 + $0x100] sm:$0xf]
        %v369 = vld [vmem:[%s273 + $0x104] sm:$0xf]
        %v370 = vld [vmem:[%s273 + $0x108] sm:$0xf]
        %v371 = vld [vmem:[%s273 + $0x10c] sm:$0xf]
        %v372 = vld [vmem:[%s273 + $0x110] sm:$0xf]
        %v373 = vld [vmem:[%s273 + $0x114] sm:$0xf]
        %v374 = vld [vmem:[%s273 + $0x118] sm:$0xf]
        %v375 = vld [vmem:[%s273 + $0x11c] sm:$0xf]
        %v376 = vld [vmem:[%s273 + $0x120] sm:$0xf]
        %v377 = vld [vmem:[%s273 + $0x124] sm:$0xf]
        %v378 = vld [vmem:[%s273 + $0x128] sm:$0xf]
        %v379 = vld [vmem:[%s273 + $0x12c] sm:$0xf]
        %v380 = vld [vmem:[%s273 + $0x130] sm:$0xf]
        %v381 = vld [vmem:[%s273 + $0x134] sm:$0xf]
        %v382 = vld [vmem:[%s273 + $0x138] sm:$0xf]
        %v383 = vld [vmem:[%s273 + $0x13c] sm:$0xf]
        %v384 = vld [vmem:[%s273 + $0x140] sm:$0xf]
        %v385 = vld [vmem:[%s273 + $0x144] sm:$0xf]
        %v386 = vld [vmem:[%s273 + $0x148] sm:$0xf]
        %v387 = vld [vmem:[%s273 + $0x14c] sm:$0xf]
        %v388 = vld [vmem:[%s273 + $0x150] sm:$0xf]
        %v389 = vld [vmem:[%s273 + $0x154] sm:$0xf]
        %v390 = vld [vmem:[%s273 + $0x158] sm:$0xf]
        %v391 = vld [vmem:[%s273 + $0x15c] sm:$0xf]
        %v392 = vld [vmem:[%s273 + $0x160] sm:$0xf]
        %v393 = vld [vmem:[%s273 + $0x164] sm:$0xf]
        %v394 = vld [vmem:[%s273 + $0x168] sm:$0xf]
        %v395 = vld [vmem:[%s273 + $0x16c] sm:$0xf]
        %v396 = vld [vmem:[%s273 + $0x170] sm:$0xf]
        %v397 = vld [vmem:[%s273 + $0x174] sm:$0xf]
        %v398 = vld [vmem:[%s273 + $0x178] sm:$0xf]
        %v399 = vld [vmem:[%s273 + $0x17c] sm:$0xf]
        %v400 = vld [vmem:[%s273 + $0x180] sm:$0xf]
        %v401 = vld [vmem:[%s273 + $0x184] sm:$0xf]
        %v402 = vld [vmem:[%s273 + $0x188] sm:$0xf]
        %v403 = vld [vmem:[%s273 + $0x18c] sm:$0xf]
        %v404 = vld [vmem:[%s273 + $0x190] sm:$0xf]
        %v405 = vld [vmem:[%s273 + $0x194] sm:$0xf]
        %v406 = vld [vmem:[%s273 + $0x198] sm:$0xf]
        %v407 = vld [vmem:[%s273 + $0x19c] sm:$0xf]
        %v408 = vld [vmem:[%s273 + $0x1a0] sm:$0xf]
        %v409 = vld [vmem:[%s273 + $0x1a4] sm:$0xf]
        %v410 = vld [vmem:[%s273 + $0x1a8] sm:$0xf]
        %v411 = vld [vmem:[%s273 + $0x1ac] sm:$0xf]
        %v412 = vld [vmem:[%s273 + $0x1b0] sm:$0xf]
        %v413 = vld [vmem:[%s273 + $0x1b4] sm:$0xf]
        %v414 = vld [vmem:[%s273 + $0x1b8] sm:$0xf]
        %v415 = vld [vmem:[%s273 + $0x1bc] sm:$0xf]
        %v416 = vld [vmem:[%s273 + $0x1c0] sm:$0xf]
        %v417 = vld [vmem:[%s273 + $0x1c4] sm:$0xf]
        %v418 = vld [vmem:[%s273 + $0x1c8] sm:$0xf]
        %v419 = vld [vmem:[%s273 + $0x1cc] sm:$0xf]
        %v420 = vld [vmem:[%s273 + $0x1d0] sm:$0xf]
        %v421 = vld [vmem:[%s273 + $0x1d4] sm:$0xf]
        %v422 = vld [vmem:[%s273 + $0x1d8] sm:$0xf]
        %v423 = vld [vmem:[%s273 + $0x1dc] sm:$0xf]
        %v424 = vld [vmem:[%s273 + $0x1e0] sm:$0xf]
        %v425 = vld [vmem:[%s273 + $0x1e4] sm:$0xf]
        %v426 = vld [vmem:[%s273 + $0x1e8] sm:$0xf]
        %v427 = vld [vmem:[%s273 + $0x1ec] sm:$0xf]
        %v428 = vld [vmem:[%s273 + $0x1f0] sm:$0xf]
        %v429 = vld [vmem:[%s273 + $0x1f4] sm:$0xf]
        %v430 = vld [vmem:[%s273 + $0x1f8] sm:$0xf]
        %v431 = vld [vmem:[%s273 + $0x1fc] sm:$0xf]
        %v440 = vunpack.c.l.b16 %v296
        %v441 = vunpack.c.h.b16 %v296
        %v442 = vunpack.c.l.b16 %v297
        %v443 = vunpack.c.h.b16 %v297
        %v444 = vunpack.c.l.b16 %v298
        %v445 = vunpack.c.h.b16 %v298
        %v446 = vunpack.c.l.b16 %v299
        %v447 = vunpack.c.h.b16 %v299
        %v448 = vunpack.c.l.b16 %v300
        %v449 = vunpack.c.h.b16 %v300
        %v450 = vunpack.c.l.b16 %v301
        %v451 = vunpack.c.h.b16 %v301
        %v452 = vunpack.c.l.b16 %v302
        %v453 = vunpack.c.h.b16 %v302
        %v454 = vunpack.c.l.b16 %v303
        %v455 = vunpack.c.h.b16 %v303
        %v456 = vpack.c.b16 %v448, %v440
        %v457 = vpack.c.b16 %v449, %v441
        %v458 = vpack.c.b16 %v450, %v442
        %v459 = vpack.c.b16 %v451, %v443
        %v460 = vpack.c.b16 %v452, %v444
        %v461 = vpack.c.b16 %v453, %v445
        %v462 = vpack.c.b16 %v454, %v446
        %v463 = vpack.c.b16 %v455, %v447
        %v600 = vunpack.c.l.b16 %v304
        %v601 = vunpack.c.l.b16 %v305
        %v602 = vunpack.c.l.b16 %v306
        %v603 = vunpack.c.l.b16 %v307
        %v604 = vunpack.c.l.b16 %v308
        %v605 = vunpack.c.l.b16 %v309
        %v606 = vunpack.c.l.b16 %v310
        %v607 = vunpack.c.l.b16 %v311
        %v608 = vunpack.c.l.b16 %v312
        %v609 = vunpack.c.l.b16 %v313
        %v610 = vunpack.c.l.b16 %v314
        %v611 = vunpack.c.l.b16 %v315
        %v612 = vunpack.c.l.b16 %v316
        %v613 = vunpack.c.l.b16 %v317
        %v614 = vunpack.c.l.b16 %v318
        %v615 = vunpack.c.l.b16 %v319
        %v616 = vunpack.c.l.b16 %v320
        %v617 = vunpack.c.l.b16 %v321
        %v618 = vunpack.c.l.b16 %v322
        %v619 = vunpack.c.l.b16 %v323
        %v620 = vunpack.c.l.b16 %v324
        %v621 = vunpack.c.l.b16 %v325
        %v622 = vunpack.c.l.b16 %v326
        %v623 = vunpack.c.l.b16 %v327
        %v624 = vunpack.c.l.b16 %v328
        %v625 = vunpack.c.l.b16 %v329
        %v626 = vunpack.c.l.b16 %v330
        %v627 = vunpack.c.l.b16 %v331
        %v628 = vunpack.c.l.b16 %v332
        %v629 = vunpack.c.l.b16 %v333
        %v630 = vunpack.c.l.b16 %v334
        %v631 = vunpack.c.l.b16 %v335
        %v632 = vunpack.c.l.b16 %v336
        %v633 = vunpack.c.l.b16 %v337
        %v634 = vunpack.c.l.b16 %v338
        %v635 = vunpack.c.l.b16 %v339
        %v636 = vunpack.c.l.b16 %v340
        %v637 = vunpack.c.l.b16 %v341
        %v638 = vunpack.c.l.b16 %v342
        %v639 = vunpack.c.l.b16 %v343
        %v640 = vunpack.c.l.b16 %v344
        %v641 = vunpack.c.l.b16 %v345
        %v642 = vunpack.c.l.b16 %v346
        %v643 = vunpack.c.l.b16 %v347
        %v644 = vunpack.c.l.b16 %v348
        %v645 = vunpack.c.l.b16 %v349
        %v646 = vunpack.c.l.b16 %v350
        %v647 = vunpack.c.l.b16 %v351
        %v648 = vunpack.c.l.b16 %v352
        %v649 = vunpack.c.l.b16 %v353
        %v650 = vunpack.c.l.b16 %v354
        %v651 = vunpack.c.l.b16 %v355
        %v652 = vunpack.c.l.b16 %v356
        %v653 = vunpack.c.l.b16 %v357
        %v654 = vunpack.c.l.b16 %v358
        %v655 = vunpack.c.l.b16 %v359
        %v656 = vunpack.c.l.b16 %v360
        %v657 = vunpack.c.l.b16 %v361
        %v658 = vunpack.c.l.b16 %v362
        %v659 = vunpack.c.l.b16 %v363
        %v660 = vunpack.c.l.b16 %v364
        %v661 = vunpack.c.l.b16 %v365
        %v662 = vunpack.c.l.b16 %v366
        %v663 = vunpack.c.l.b16 %v367
        %v664 = vunpack.c.l.b16 %v368
        %v665 = vunpack.c.l.b16 %v369
        %v666 = vunpack.c.l.b16 %v370
        %v667 = vunpack.c.l.b16 %v371
        %v668 = vunpack.c.l.b16 %v372
        %v669 = vunpack.c.l.b16 %v373
        %v670 = vunpack.c.l.b16 %v374
        %v671 = vunpack.c.l.b16 %v375
        %v672 = vunpack.c.l.b16 %v376
        %v673 = vunpack.c.l.b16 %v377
        %v674 = vunpack.c.l.b16 %v378
        %v675 = vunpack.c.l.b16 %v379
        %v676 = vunpack.c.l.b16 %v380
        %v677 = vunpack.c.l.b16 %v381
        %v678 = vunpack.c.l.b16 %v382
        %v679 = vunpack.c.l.b16 %v383
        %v680 = vunpack.c.l.b16 %v384
        %v681 = vunpack.c.l.b16 %v385
        %v682 = vunpack.c.l.b16 %v386
        %v683 = vunpack.c.l.b16 %v387
        %v684 = vunpack.c.l.b16 %v388
        %v685 = vunpack.c.l.b16 %v389
        %v686 = vunpack.c.l.b16 %v390
        %v687 = vunpack.c.l.b16 %v391
        %v688 = vunpack.c.l.b16 %v392
        %v689 = vunpack.c.l.b16 %v393
        %v690 = vunpack.c.l.b16 %v394
        %v691 = vunpack.c.l.b16 %v395
        %v692 = vunpack.c.l.b16 %v396
        %v693 = vunpack.c.l.b16 %v397
        %v694 = vunpack.c.l.b16 %v398
        %v695 = vunpack.c.l.b16 %v399
        %v696 = vunpack.c.l.b16 %v400
        %v697 = vunpack.c.l.b16 %v401
        %v698 = vunpack.c.l.b16 %v402
        %v699 = vunpack.c.l.b16 %v403
        %v700 = vunpack.c.l.b16 %v404
        %v701 = vunpack.c.l.b16 %v405
        %v702 = vunpack.c.l.b16 %v406
        %v703 = vunpack.c.l.b16 %v407
        %v704 = vunpack.c.l.b16 %v408
        %v705 = vunpack.c.l.b16 %v409
        %v706 = vunpack.c.l.b16 %v410
        %v707 = vunpack.c.l.b16 %v411
        %v708 = vunpack.c.l.b16 %v412
        %v709 = vunpack.c.l.b16 %v413
        %v710 = vunpack.c.l.b16 %v414
        %v711 = vunpack.c.l.b16 %v415
        %v712 = vunpack.c.l.b16 %v416
        %v713 = vunpack.c.l.b16 %v417
        %v714 = vunpack.c.l.b16 %v418
        %v715 = vunpack.c.l.b16 %v419
        %v716 = vunpack.c.l.b16 %v420
        %v717 = vunpack.c.l.b16 %v421
        %v718 = vunpack.c.l.b16 %v422
        %v719 = vunpack.c.l.b16 %v423
        %v720 = vunpack.c.l.b16 %v424
        %v721 = vunpack.c.l.b16 %v425
        %v722 = vunpack.c.l.b16 %v426
        %v723 = vunpack.c.l.b16 %v427
        %v724 = vunpack.c.l.b16 %v428
        %v725 = vunpack.c.l.b16 %v429
        %v726 = vunpack.c.l.b16 %v430
        %v727 = vunpack.c.l.b16 %v431
        %v728 = vpack.c.b16 %v601, %v600
        %v729 = vpack.c.b16 %v603, %v602
        %v730 = vpack.c.b16 %v605, %v604
        %v731 = vpack.c.b16 %v607, %v606
        %v732 = vpack.c.b16 %v609, %v608
        %v733 = vpack.c.b16 %v611, %v610
        %v734 = vpack.c.b16 %v613, %v612
        %v735 = vpack.c.b16 %v615, %v614
        %v736 = vpack.c.b16 %v617, %v616
        %v737 = vpack.c.b16 %v619, %v618
        %v738 = vpack.c.b16 %v621, %v620
        %v739 = vpack.c.b16 %v623, %v622
        %v740 = vpack.c.b16 %v625, %v624
        %v741 = vpack.c.b16 %v627, %v626
        %v742 = vpack.c.b16 %v629, %v628
        %v743 = vpack.c.b16 %v631, %v630
        %v744 = vpack.c.b16 %v633, %v632
        %v745 = vpack.c.b16 %v635, %v634
        %v746 = vpack.c.b16 %v637, %v636
        %v747 = vpack.c.b16 %v639, %v638
        %v748 = vpack.c.b16 %v641, %v640
        %v749 = vpack.c.b16 %v643, %v642
        %v750 = vpack.c.b16 %v645, %v644
        %v751 = vpack.c.b16 %v647, %v646
        %v752 = vpack.c.b16 %v649, %v648
        %v753 = vpack.c.b16 %v651, %v650
        %v754 = vpack.c.b16 %v653, %v652
        %v755 = vpack.c.b16 %v655, %v654
        %v756 = vpack.c.b16 %v657, %v656
        %v757 = vpack.c.b16 %v659, %v658
        %v758 = vpack.c.b16 %v661, %v660
        %v759 = vpack.c.b16 %v663, %v662
        %v760 = vpack.c.b16 %v665, %v664
        %v761 = vpack.c.b16 %v667, %v666
        %v762 = vpack.c.b16 %v669, %v668
        %v763 = vpack.c.b16 %v671, %v670
        %v764 = vpack.c.b16 %v673, %v672
        %v765 = vpack.c.b16 %v675, %v674
        %v766 = vpack.c.b16 %v677, %v676
        %v767 = vpack.c.b16 %v679, %v678
        %v768 = vpack.c.b16 %v681, %v680
        %v769 = vpack.c.b16 %v683, %v682
        %v770 = vpack.c.b16 %v685, %v684
        %v771 = vpack.c.b16 %v687, %v686
        %v772 = vpack.c.b16 %v689, %v688
        %v773 = vpack.c.b16 %v691, %v690
        %v774 = vpack.c.b16 %v693, %v692
        %v775 = vpack.c.b16 %v695, %v694
        %v776 = vpack.c.b16 %v697, %v696
        %v777 = vpack.c.b16 %v699, %v698
        %v778 = vpack.c.b16 %v701, %v700
        %v779 = vpack.c.b16 %v703, %v702
        %v780 = vpack.c.b16 %v705, %v704
        %v781 = vpack.c.b16 %v707, %v706
        %v782 = vpack.c.b16 %v709, %v708
        %v783 = vpack.c.b16 %v711, %v710
        %v784 = vpack.c.b16 %v713, %v712
        %v785 = vpack.c.b16 %v715, %v714
        %v786 = vpack.c.b16 %v717, %v716
        %v787 = vpack.c.b16 %v719, %v718
        %v788 = vpack.c.b16 %v721, %v720
        %v789 = vpack.c.b16 %v723, %v722
        %v790 = vpack.c.b16 %v725, %v724
        %v791 = vpack.c.b16 %v727, %v726
        %856 = vmatprep.subr.bf16.mxu0 0
        %857 = vmatpush1.bf16.msra.mxu0 %v728
        %858 = vmatprep.subr.bf16.mxu0 0
        %859 = vmatpush1.bf16.msra.mxu0 %v729
        %860 = vmatprep.subr.bf16.mxu0 0
        %861 = vmatpush1.bf16.msra.mxu0 %v730
        %862 = vmatprep.subr.bf16.mxu0 0
        %863 = vmatpush1.bf16.msra.mxu0 %v731
        %864 = vmatprep.subr.bf16.mxu0 0
        %865 = vmatpush1.bf16.msra.mxu0 %v732
        %866 = vmatprep.subr.bf16.mxu0 0
        %867 = vmatpush1.bf16.msra.mxu0 %v733
        %868 = vmatprep.subr.bf16.mxu0 0
        %869 = vmatpush1.bf16.msra.mxu0 %v734
        %870 = vmatprep.subr.bf16.mxu0 0
        %871 = vmatpush1.bf16.msra.mxu0 %v735
        %872 = vmatprep.subr.bf16.mxu0 0
        %873 = vmatpush1.bf16.msra.mxu0 %v736
        %874 = vmatprep.subr.bf16.mxu0 0
        %875 = vmatpush1.bf16.msra.mxu0 %v737
        %876 = vmatprep.subr.bf16.mxu0 0
        %877 = vmatpush1.bf16.msra.mxu0 %v738
        %878 = vmatprep.subr.bf16.mxu0 0
        %879 = vmatpush1.bf16.msra.mxu0 %v739
        %880 = vmatprep.subr.bf16.mxu0 0
        %881 = vmatpush1.bf16.msra.mxu0 %v740
        %882 = vmatprep.subr.bf16.mxu0 0
        %883 = vmatpush1.bf16.msra.mxu0 %v741
        %884 = vmatprep.subr.bf16.mxu0 0
        %885 = vmatpush1.bf16.msra.mxu0 %v742
        %886 = vmatprep.subr.bf16.mxu0 0
        %887 = vmatpush1.bf16.msra.mxu0 %v743
        %888 = vmatprep.mubr.bf16.mxu0 %v457
        %889 = vmatmul.mubr.bf16.gmra.mrb[0].mxu0 %v456
        %v890 = vpop.f32.mrb[0].mxu0
        %v891 = vadd.f32 0.0, %v890
        %v892 = vpop.f32.mrb[0].mxu0
        %v893 = vpop.f32.mrb[0].mxu0
        %v894 = vadd.f32 0.0, %v893
        %v895 = vpop.f32.mrb[0].mxu0
        %896 = vdwg.mxu0
        %897 = vmatprep.subr.bf16.mxu0 0
        %898 = vmatpush1.bf16.msra.mxu0 %v744
        %899 = vmatprep.subr.bf16.mxu0 0
        %900 = vmatpush1.bf16.msra.mxu0 %v745
        %901 = vmatprep.subr.bf16.mxu0 0
        %902 = vmatpush1.bf16.msra.mxu0 %v746
        %903 = vmatprep.subr.bf16.mxu0 0
        %904 = vmatpush1.bf16.msra.mxu0 %v747
        %905 = vmatprep.subr.bf16.mxu0 0
        %906 = vmatpush1.bf16.msra.mxu0 %v748
        %907 = vmatprep.subr.bf16.mxu0 0
        %908 = vmatpush1.bf16.msra.mxu0 %v749
        %909 = vmatprep.subr.bf16.mxu0 0
        %910 = vmatpush1.bf16.msra.mxu0 %v750
        %911 = vmatprep.subr.bf16.mxu0 0
        %912 = vmatpush1.bf16.msra.mxu0 %v751
        %913 = vmatprep.subr.bf16.mxu0 0
        %914 = vmatpush1.bf16.msra.mxu0 %v752
        %915 = vmatprep.subr.bf16.mxu0 0
        %916 = vmatpush1.bf16.msra.mxu0 %v753
        %917 = vmatprep.subr.bf16.mxu0 0
        %918 = vmatpush1.bf16.msra.mxu0 %v754
        %919 = vmatprep.subr.bf16.mxu0 0
        %920 = vmatpush1.bf16.msra.mxu0 %v755
        %921 = vmatprep.subr.bf16.mxu0 0
        %922 = vmatpush1.bf16.msra.mxu0 %v756
        %923 = vmatprep.subr.bf16.mxu0 0
        %924 = vmatpush1.bf16.msra.mxu0 %v757
        %925 = vmatprep.subr.bf16.mxu0 0
        %926 = vmatpush1.bf16.msra.mxu0 %v758
        %927 = vmatprep.subr.bf16.mxu0 0
        %928 = vmatpush1.bf16.msra.mxu0 %v759
        %929 = vmatprep.mubr.bf16.mxu0 %v459
        %930 = vmatmul.mubr.bf16.gmra.mrb[0].mxu0 %v458
        %v931 = vpop.f32.mrb[0].mxu0
        %v932 = vadd.f32 %v891, %v931
        %v933 = vpop.f32.mrb[0].mxu0
        %v934 = vpop.f32.mrb[0].mxu0
        %v935 = vadd.f32 %v894, %v934
        %v936 = vpop.f32.mrb[0].mxu0
        %937 = vdwg.mxu0
        %938 = vmatprep.subr.bf16.mxu0 0
        %939 = vmatpush1.bf16.msra.mxu0 %v760
        %940 = vmatprep.subr.bf16.mxu0 0
        %941 = vmatpush1.bf16.msra.mxu0 %v761
        %942 = vmatprep.subr.bf16.mxu0 0
        %943 = vmatpush1.bf16.msra.mxu0 %v762
        %944 = vmatprep.subr.bf16.mxu0 0
        %945 = vmatpush1.bf16.msra.mxu0 %v763
        %946 = vmatprep.subr.bf16.mxu0 0
        %947 = vmatpush1.bf16.msra.mxu0 %v764
        %948 = vmatprep.subr.bf16.mxu0 0
        %949 = vmatpush1.bf16.msra.mxu0 %v765
        %950 = vmatprep.subr.bf16.mxu0 0
        %951 = vmatpush1.bf16.msra.mxu0 %v766
        %952 = vmatprep.subr.bf16.mxu0 0
        %953 = vmatpush1.bf16.msra.mxu0 %v767
        %954 = vmatprep.subr.bf16.mxu0 0
        %955 = vmatpush1.bf16.msra.mxu0 %v768
        %956 = vmatprep.subr.bf16.mxu0 0
        %957 = vmatpush1.bf16.msra.mxu0 %v769
        %958 = vmatprep.subr.bf16.mxu0 0
        %959 = vmatpush1.bf16.msra.mxu0 %v770
        %960 = vmatprep.subr.bf16.mxu0 0
        %961 = vmatpush1.bf16.msra.mxu0 %v771
        %962 = vmatprep.subr.bf16.mxu0 0
        %963 = vmatpush1.bf16.msra.mxu0 %v772
        %964 = vmatprep.subr.bf16.mxu0 0
        %965 = vmatpush1.bf16.msra.mxu0 %v773
        %966 = vmatprep.subr.bf16.mxu0 0
        %967 = vmatpush1.bf16.msra.mxu0 %v774
        %968 = vmatprep.subr.bf16.mxu0 0
        %969 = vmatpush1.bf16.msra.mxu0 %v775
        %970 = vmatprep.mubr.bf16.mxu0 %v461
        %971 = vmatmul.mubr.bf16.gmra.mrb[0].mxu0 %v460
        %v972 = vpop.f32.mrb[0].mxu0
        %v973 = vadd.f32 %v932, %v972
        %v974 = vpop.f32.mrb[0].mxu0
        %v975 = vpop.f32.mrb[0].mxu0
        %v976 = vadd.f32 %v935, %v975
        %v977 = vpop.f32.mrb[0].mxu0
        %978 = vdwg.mxu0
        %979 = vmatprep.subr.bf16.mxu0 0
        %980 = vmatpush1.bf16.msra.mxu0 %v776
        %981 = vmatprep.subr.bf16.mxu0 0
        %982 = vmatpush1.bf16.msra.mxu0 %v777
        %983 = vmatprep.subr.bf16.mxu0 0
        %984 = vmatpush1.bf16.msra.mxu0 %v778
        %985 = vmatprep.subr.bf16.mxu0 0
        %986 = vmatpush1.bf16.msra.mxu0 %v779
        %987 = vmatprep.subr.bf16.mxu0 0
        %988 = vmatpush1.bf16.msra.mxu0 %v780
        %989 = vmatprep.subr.bf16.mxu0 0
        %990 = vmatpush1.bf16.msra.mxu0 %v781
        %991 = vmatprep.subr.bf16.mxu0 0
        %992 = vmatpush1.bf16.msra.mxu0 %v782
        %993 = vmatprep.subr.bf16.mxu0 0
        %994 = vmatpush1.bf16.msra.mxu0 %v783
        %995 = vmatprep.subr.bf16.mxu0 0
        %996 = vmatpush1.bf16.msra.mxu0 %v784
        %997 = vmatprep.subr.bf16.mxu0 0
        %998 = vmatpush1.bf16.msra.mxu0 %v785
        %999 = vmatprep.subr.bf16.mxu0 0
        %1000 = vmatpush1.bf16.msra.mxu0 %v786
        %1001 = vmatprep.subr.bf16.mxu0 0
        %1002 = vmatpush1.bf16.msra.mxu0 %v787
        %1003 = vmatprep.subr.bf16.mxu0 0
        %1004 = vmatpush1.bf16.msra.mxu0 %v788
        %1005 = vmatprep.subr.bf16.mxu0 0
        %1006 = vmatpush1.bf16.msra.mxu0 %v789
        %1007 = vmatprep.subr.bf16.mxu0 0
        %1008 = vmatpush1.bf16.msra.mxu0 %v790
        %1009 = vmatprep.subr.bf16.mxu0 0
        %1010 = vmatpush1.bf16.msra.mxu0 %v791
        %1011 = vmatprep.mubr.bf16.mxu0 %v463
        %1012 = vmatmul.mubr.bf16.gmra.mrb[0].mxu0 %v462
        %v1013 = vpop.f32.mrb[0].mxu0
        %v1014 = vadd.f32 %v973, %v1013
        %v1015 = vpop.f32.mrb[0].mxu0
        %v1016 = vpop.f32.mrb[0].mxu0
        %v1017 = vadd.f32 %v976, %v1016
        %v1018 = vpop.f32.mrb[0].mxu0
        %1019 = vdwg.mxu0
        %v1020 = vadd.f32 %v294, %v1014
        %v1021 = vadd.f32 %v295, %v1017
        %1022 = vst [vmem:[#allocation2] sm:$0xff] %v1020
        %1023 = vst [vmem:[#allocation2 + $0x8] sm:$0xff] %v1021
        %p1024 = scmp.eq.s32.totalorder %s21, 1
        // Predicated region
        $region60: #{patchgan_forward.3} parent=50 // pred_check
          %p1025 = pneg %p1024
        $region61: #{patchgan_forward.3} parent=50 // pred_check_branch
          %1027 = sbr.rel (%p1025) target = $region63
        $region62: #{patchgan_forward.3} parent=50 // pred_region
          %v1028 = vld [vmem:[#allocation2] sm:$0xff]
          %v1029 = vld [vmem:[#allocation2 + $0x8] sm:$0xff]
          %v1030 = vld [vmem:[%s277] sm:$0x1]
          %v1032 = vlaneseq
          %v1033 = vshrl.u32 %v1032, 7
          %v1034 = vsub.s32 0, %v1033
          %v1035 = vrot.slane %v1030, %v1034
          %v1037 = vadd.f32 %v1028, %v1035
          %v1038 = vadd.f32 %v1029, %v1035
          %vm1039 = vcmp.ge.f32.partialorder %v1037, 0.0
          %vm1040 = vcmp.ge.f32.partialorder %v1038, 0.0
          %v1041 = vmul.f32 %v1037, 0.2
          %v1042 = vmul.f32 %v1038, 0.2
          %v1043 = vsel %vm1039, %v1037, %v1041
          %v1044 = vsel %vm1040, %v1038, %v1042
          %v1045 = vpack.c.bf16 %v1044, %v1043
          %v1047 = vunpack.c.l.b16 %v1045
          %v1048 = vunpack.c.h.b16 %v1045
          %v1049 = vpack.c.b16 %v1047, %v1047
          %v1050 = vpack.c.b16 %v1048, %v1048
          %1053 = vst [vmem:[%s285] sm:$0xf] %v1049
          %1054 = vst [vmem:[%s285 + $0x4] sm:$0xf] %v1050
        $region63: #{patchgan_forward.3} parent=50 // pred_fallthru
          _
        %s1055 = smul.u32 2, %s19
        %p1056 = scmp.lt.s32.totalorder %s1055, 3
        %s1057 = scalar_select %p1056, %s1055, 3
        %p1058 = scmp.lt.s32.totalorder %s20, 0
        %s1059 = scalar_select %p1058, %s20, 0
        %s1060 = sadd.s32 %s1059, %s1057
        %s1061 = smul.addr %s1060, 4
        %s1062 = scalar_lea.vmem %s3, %s1061
        // Predicated region
        $region64: #{patchgan_forward.3} parent=50 // pred_check
          %p1063 = pneg %p135
        $region65: #{patchgan_forward.3} parent=50 // pred_check_branch
          %1065 = sbr.rel (%p1063) target = $region67
        $region66: #{patchgan_forward.3} parent=50 // pred_region
          %s1066 = smul.u32 2, %s19
        $region67: #{patchgan_forward.3} parent=50 // pred_fallthru
          _
      $region51: #{patchgan_forward.3} parent=5 // pred_fallthru
        _
      %p1067 = scmp.le.s32.totalorder 2, %s9
      // Predicated region
      $region68: #{patchgan_forward.3} parent=5 // pred_check
        %p1068 = pneg %p1067
      $region69: #{patchgan_forward.3} parent=5 // pred_check_branch
        %1070 = sbr.rel (%p1068) target = $region71
      $region70: #{patchgan_forward.3} parent=5 // pred_region
        %s1071 = ssub.s32 %s9, 2
        // Predicated region
        $region72: #{patchgan_forward.3} parent=70 // pred_check
          %p1072 = pneg %p141
        $region73: #{patchgan_forward.3} parent=70 // pred_check_branch
          %1074 = sbr.rel (%p1072) target = $region75
        $region74: #{patchgan_forward.3} parent=70 // pred_region
          %s1075 = smul.u32 2, %s22
          %p1076 = scmp.lt.s32.totalorder %s1075, 3
          %s1077 = scalar_select %p1076, %s1075, 3
          %p1078 = scmp.lt.s32.totalorder %s23, 0
          %s1079 = scalar_select %p1078, %s23, 0
          %s1080 = sadd.s32 %s1079, %s1077
          %s1081 = smul.addr %s1080, 4
          %s1082 = scalar_lea.vmem %s3, %s1081
        $region75: #{patchgan_forward.3} parent=70 // pred_fallthru
          _
      $region71: #{patchgan_forward.3} parent=5 // pred_fallthru
        _
    $region6: #{patchgan_forward.3} parent=1 // loop_footer
      %s13 = sadd.s32 1, %s9
    $region7: #{patchgan_forward.3} parent=1 // loop_footer_branch
      %8 = sbr.rel target = $region3
    $region8: #{patchgan_forward.3} parent=1 // loop_exit
      _

</llo_original>
